<compile_context>
chip_gen: v7x
topology: tpu7x:2x2x1
jax: 0.10.0
libtpu: 0.0.40
codegen_flags: <defaults>
</compile_context>

<pallas_src>
import math
import jax
import jax.numpy as jnp
from jax import lax
from jax.experimental import pallas as pl
from jax.experimental.pallas import tpu as pltpu


def _encoder_kernel(emb_ref, wih_ref, whh_ref, bgx_ref, bhn_ref, mask_ref,
                    wfc_ref, bfc_ref, out_ref, hid_ref, gx_sc):
    """Single-invocation bidirectional GRU encoder.

    emb_ref : (T, B, E)   embedded tokens
    wih_ref : (E, 6H)     fused input->gate weights, cols [r_f r_b|z_f z_b|n_f n_b]
    whh_ref : (2H, 6H)    block-diagonal hidden->gate weights (no cross terms)
    bgx_ref : (1, 6H)     b_ih (+ b_hh folded in for the r and z gates)
    bhn_ref : (1, 2H)     b_hh of the n gate (must stay inside r * (...))
    mask_ref: (1, 6H)     1.0 on forward-direction gate columns
    wfc_ref : (2H, D), bfc_ref : (1, D)
    out_ref : (T, B, 2H)  bidirectional GRU outputs (fwd || bwd per timestep)
    hid_ref : (B, D)      tanh(fc([h_fwd_last, h_bwd_last]))
    gx_sc   : VMEM (T, B, 6H) scratch holding the hoisted input projection
    """
    T, B, _ = emb_ref.shape
    H2 = whh_ref.shape[0]          # 2*H
    H = H2 // 2

    # ---- Phase 1: time-independent input projection for all steps and both
    # directions (one fused weight matrix). These matmuls are independent, so
    # they are off the sequential critical path and pipeline on the MXU.
    wih = wih_ref[...]
    bgx = bgx_ref[...]

    def proj_body(t, carry):
        gx_sc[t] = (jnp.dot(emb_ref[t], wih, preferred_element_type=jnp.float32)
                    + bgx)
        return carry

    # T is small here; for long sequences use a bounded unroll factor instead.
    lax.fori_loop(0, T, proj_body, 0, unroll=True)

    # ---- Phase 2: fused fwd+bwd recurrence — the only serial part.
    # Per step: ONE (B,2H)x(2H,6H) MXU matmul + shared VPU/EUP gate math.
    whh = whh_ref[...]
    bhn = jnp.broadcast_to(bhn_ref[...], (B, H2))                # hoisted
    take_fwd = jnp.broadcast_to(mask_ref[...] > 0.5, (B, 3 * H2))  # hoisted

    def step(t, h):                                   # h = [h_fwd | h_bwd]
        rt = T - 1 - t
        # forward gates consume time t, backward gates consume time T-1-t
        gx = jnp.where(take_fwd, gx_sc[t], gx_sc[rt])            # (B, 6H)
        gh = jnp.dot(h, whh, preferred_element_type=jnp.float32)  # (B, 6H)
        rz = jax.nn.sigmoid(gx[:, :2 * H2] + gh[:, :2 * H2])
        r, z = rz[:, :H2], rz[:, H2:]
        n = jnp.tanh(gx[:, 2 * H2:] + r * (gh[:, 2 * H2:] + bhn))
        h_new = (1.0 - z) * n + z * h
        out_ref[t, :, :H] = h_new[:, :H]     # forward output at time t
        out_ref[rt, :, H:] = h_new[:, H:]    # backward output at time T-1-t
        return h_new

    h_last = lax.fori_loop(0, T, step, jnp.zeros((B, H2), jnp.float32),
                           unroll=True)

    # ---- Final projection; h_last is already the concatenated [h_f | h_b].
    hid_ref[...] = jnp.tanh(
        jnp.dot(h_last, wfc_ref[...], preferred_element_type=jnp.float32)
        + bfc_ref[...])


def encoder_forward(src, params):
    emb_table = params["embedding"]
    T, B = src.shape
    E = emb_table.shape[1]
    H = params["whh_f"].shape[0]
    D = params["wfc"].shape[1]
    H2, G = 2 * H, 6 * H

    # glue: embedding gather (dropout is identity at inference)
    embedded = jnp.take(emb_table, src, axis=0).astype(jnp.float32)  # (T, B, E)

    # ---- one-time weight packing (constant-folded under jit; in production
    # this would be done once at parameter-load time).
    def gate_cat(wf, wb):
        # torch per-direction gate order (r, z, n) -> [r_f r_b | z_f z_b | n_f n_b]
        return jnp.concatenate(
            [wf[..., 0:H], wb[..., 0:H],
             wf[..., H:2 * H], wb[..., H:2 * H],
             wf[..., 2 * H:3 * H], wb[..., 2 * H:3 * H]], axis=-1)

    def blockdiag(a, b):
        top = jnp.concatenate([a, jnp.zeros_like(b)], axis=1)
        bot = jnp.concatenate([jnp.zeros_like(a), b], axis=1)
        return jnp.concatenate([top, bot], axis=0)

    wih_cat = gate_cat(params["wih_f"], params["wih_b"])             # (E, 6H)
    whh_blk = jnp.concatenate(
        [blockdiag(params["whh_f"][:, g * H:(g + 1) * H],
                   params["whh_b"][:, g * H:(g + 1) * H]) for g in range(3)],
        axis=1)                                                      # (2H, 6H)

    bih_cat = gate_cat(params["bih_f"], params["bih_b"])             # (1, 6H)
    bhh_cat = gate_cat(params["bhh_f"], params["bhh_b"])             # (1, 6H)
    # r/z gates: fold b_ih + b_hh into the precomputed projection;
    # n gate: only b_ih (its b_hh is multiplied by r inside the loop).
    b_gx = jnp.concatenate([bih_cat[:, :4 * H] + bhh_cat[:, :4 * H],
                            bih_cat[:, 4 * H:]], axis=1)             # (1, 6H)
    b_hn = bhh_cat[:, 4 * H:]                                        # (1, 2H)
    dir_mask = jnp.tile(
        jnp.concatenate([jnp.ones((1, H), jnp.float32),
                         jnp.zeros((1, H), jnp.float32)], axis=1),
        (1, 3))                                                      # (1, 6H)

    vmem_spec = lambda: pl.BlockSpec(memory_space=pltpu.MemorySpace.VMEM)
    outputs, hidden = pl.pallas_call(
        _encoder_kernel,
        out_shape=(jax.ShapeDtypeStruct((T, B, H2), jnp.float32),
                   jax.ShapeDtypeStruct((B, D), jnp.float32)),
        # No grid: everything fits in VMEM at these sizes; whole arrays are
        # mapped in as single blocks. (For scaled-up E/H/T, chunk T via a grid
        # and set pltpu.CompilerParams(vmem_limit_bytes=...).)
        in_specs=[vmem_spec() for _ in range(8)],
        out_specs=(vmem_spec(), vmem_spec()),
        scratch_shapes=[pltpu.VMEM((T, B, G), jnp.float32)],
    )(embedded, wih_cat, whh_blk, b_gx, b_hn, dir_mask,
      params["wfc"], params["bfc"])
    return outputs, hidden


def encoder_reference(src, params):
    """Pure-JAX reference (lax.scan GRU) for correctness checking."""
    emb = jnp.take(params["embedding"], src, axis=0)
    H = params["whh_f"].shape[0]
    B = src.shape[1]

    def make_step(wih, whh, bih, bhh):
        def step(h, x):
            gx = x @ wih + bih
            gh = h @ whh + bhh
            r = jax.nn.sigmoid(gx[:, :H] + gh[:, :H])
            z = jax.nn.sigmoid(gx[:, H:2 * H] + gh[:, H:2 * H])
            n = jnp.tanh(gx[:, 2 * H:] + r * gh[:, 2 * H:])
            h_new = (1.0 - z) * n + z * h
            return h_new, h_new
        return step

    h0 = jnp.zeros((B, H), jnp.float32)
    hf, outs_f = lax.scan(
        make_step(params["wih_f"], params["whh_f"], params["bih_f"], params["bhh_f"]),
        h0, emb)
    hb, outs_b_rev = lax.scan(
        make_step(params["wih_b"], params["whh_b"], params["bih_b"], params["bhh_b"]),
        h0, jnp.flip(emb, axis=0))
    outputs = jnp.concatenate([outs_f, jnp.flip(outs_b_rev, axis=0)], axis=-1)
    hidden = jnp.tanh(jnp.concatenate([hf, hb], axis=1) @ params["wfc"]
                      + params["bfc"])
    return outputs, hidden


def init_params(key, input_dim, emb_dim, enc_hid, dec_hid):
    ks = jax.random.split(key, 12)
    kh = 1.0 / math.sqrt(enc_hid)
    kf = 1.0 / math.sqrt(2 * enc_hid)
    u = lambda k, shape, s: jax.random.uniform(k, shape, jnp.float32, -s, s)
    return {
        "embedding": jax.random.normal(ks[0], (input_dim, emb_dim), jnp.float32),
        "wih_f": u(ks[1], (emb_dim, 3 * enc_hid), kh),
        "whh_f": u(ks[2], (enc_hid, 3 * enc_hid), kh),
        "bih_f": u(ks[3], (1, 3 * enc_hid), kh),
        "bhh_f": u(ks[4], (1, 3 * enc_hid), kh),
        "wih_b": u(ks[5], (emb_dim, 3 * enc_hid), kh),
        "whh_b": u(ks[6], (enc_hid, 3 * enc_hid), kh),
        "bih_b": u(ks[7], (1, 3 * enc_hid), kh),
        "bhh_b": u(ks[8], (1, 3 * enc_hid), kh),
        "wfc": u(ks[9], (2 * enc_hid, dec_hid), kf),
        "bfc": u(ks[10], (1, dec_hid), kf),
    }


if __name__ == "__main__":
    INPUT_DIM, EMB_DIM, ENC_HID, DEC_HID = 50, 16, 32, 32
    T, B = 8, 4

    root = jax.random.PRNGKey(0)
    k_param, k_src = jax.random.split(root)
    params = init_params(k_param, INPUT_DIM, EMB_DIM, ENC_HID, DEC_HID)
    src = jax.random.randint(k_src, (T, B), 0, INPUT_DIM, dtype=jnp.int32)

    outputs, hidden = jax.jit(encoder_forward)(src, params)
    jax.block_until_ready((outputs, hidden))

    ref_outputs, ref_hidden = encoder_reference(src, params)
    assert outputs.shape == (T, B, 2 * ENC_HID)
    assert hidden.shape == (B, DEC_HID)
    # Tolerance accounts for MXU f32 multi-pass matmuls vs. the XLA reference
    # and the (mathematically equivalent) bias refactoring.
    assert jnp.allclose(outputs, ref_outputs, atol=1e-4, rtol=1e-4)
    assert jnp.allclose(hidden, ref_hidden, atol=1e-4, rtol=1e-4)

    print("KERNEL_OK")
</pallas_src>

<mosaic_0001>
module attributes {stable_mosaic.version = 11 : i64} {
  func.func @_encoder_kernel(%arg0: memref<8x4x16xf32, #tpu.memory_space<vmem>>, %arg1: memref<16x192xf32, #tpu.memory_space<vmem>>, %arg2: memref<64x192xf32, #tpu.memory_space<vmem>>, %arg3: memref<1x192xf32, #tpu.memory_space<vmem>>, %arg4: memref<1x64xf32, #tpu.memory_space<vmem>>, %arg5: memref<1x192xf32, #tpu.memory_space<vmem>>, %arg6: memref<64x32xf32, #tpu.memory_space<vmem>>, %arg7: memref<1x32xf32, #tpu.memory_space<vmem>>, %arg8: memref<8x4x64xf32, #tpu.memory_space<vmem>>, %arg9: memref<4x32xf32, #tpu.memory_space<vmem>>, %arg10: memref<8x4x192xf32, #tpu.memory_space<vmem>>) attributes {dimension_semantics = [], scalar_prefetch = 0 : i64, scratch_operands = 1 : i64, tpu.core_type = #tpu.core_type<tc>} {
    %c0 = arith.constant 0 : index
    %c0_0 = arith.constant 0 : index
    %0 = vector.load %arg1[%c0, %c0_0] : memref<16x192xf32, #tpu.memory_space<vmem>>, vector<16x192xf32>
    %c0_1 = arith.constant 0 : index
    %c0_2 = arith.constant 0 : index
    %1 = vector.load %arg3[%c0_1, %c0_2] : memref<1x192xf32, #tpu.memory_space<vmem>>, vector<1x192xf32>
    %c0_i32 = arith.constant 0 : i32
    %2 = arith.index_cast %c0_i32 : i32 to index
    %c0_3 = arith.constant 0 : index
    %c0_4 = arith.constant 0 : index
    %3 = vector.load %arg0[%2, %c0_3, %c0_4] : memref<8x4x16xf32, #tpu.memory_space<vmem>>, vector<1x4x16xf32>
    %4 = vector.shape_cast %3 : vector<1x4x16xf32> to vector<4x16xf32>
    %cst = arith.constant dense<0.000000e+00> : vector<4x192xf32>
    %5 = tpu.matmul %4, %0, %cst {dimension_numbers = #tpu.dot_dimension_numbers<[1], [0], [0], [1], [0, 0, 1, 1], [], []>} : vector<4x16xf32>, vector<16x192xf32>, vector<4x192xf32> -> vector<4x192xf32>
    %6 = vector.broadcast %1 : vector<1x192xf32> to vector<4x192xf32>
    %7 = arith.addf %5, %6 : vector<4x192xf32>
    %8 = arith.index_cast %c0_i32 : i32 to index
    %c0_5 = arith.constant 0 : index
    %c0_6 = arith.constant 0 : index
    %9 = vector.load %arg10[%8, %c0_5, %c0_6] : memref<8x4x192xf32, #tpu.memory_space<vmem>>, vector<1x4x192xf32>
    %10 = vector.shape_cast %9 : vector<1x4x192xf32> to vector<4x192xf32>
    %11 = vector.shape_cast %7 : vector<4x192xf32> to vector<1x4x192xf32>
    tpu.vector_store %arg10[%8, %c0_5, %c0_6], %11 {strides = array<i32>} : memref<8x4x192xf32, #tpu.memory_space<vmem>>, vector<1x4x192xf32>,
    %c1_i32 = arith.constant 1 : i32
    %12 = arith.index_cast %c1_i32 : i32 to index
    %c0_7 = arith.constant 0 : index
    %c0_8 = arith.constant 0 : index
    %13 = vector.load %arg0[%12, %c0_7, %c0_8] : memref<8x4x16xf32, #tpu.memory_space<vmem>>, vector<1x4x16xf32>
    %14 = vector.shape_cast %13 : vector<1x4x16xf32> to vector<4x16xf32>
    %cst_9 = arith.constant dense<0.000000e+00> : vector<4x192xf32>
    %15 = tpu.matmul %14, %0, %cst_9 {dimension_numbers = #tpu.dot_dimension_numbers<[1], [0], [0], [1], [0, 0, 1, 1], [], []>} : vector<4x16xf32>, vector<16x192xf32>, vector<4x192xf32> -> vector<4x192xf32>
    %16 = vector.broadcast %1 : vector<1x192xf32> to vector<4x192xf32>
    %17 = arith.addf %15, %16 : vector<4x192xf32>
    %18 = arith.index_cast %c1_i32 : i32 to index
    %c0_10 = arith.constant 0 : index
    %c0_11 = arith.constant 0 : index
    %19 = vector.load %arg10[%18, %c0_10, %c0_11] : memref<8x4x192xf32, #tpu.memory_space<vmem>>, vector<1x4x192xf32>
    %20 = vector.shape_cast %19 : vector<1x4x192xf32> to vector<4x192xf32>
    %21 = vector.shape_cast %17 : vector<4x192xf32> to vector<1x4x192xf32>
    tpu.vector_store %arg10[%18, %c0_10, %c0_11], %21 {strides = array<i32>} : memref<8x4x192xf32, #tpu.memory_space<vmem>>, vector<1x4x192xf32>,
    %c2_i32 = arith.constant 2 : i32
    %22 = arith.index_cast %c2_i32 : i32 to index
    %c0_12 = arith.constant 0 : index
    %c0_13 = arith.constant 0 : index
    %23 = vector.load %arg0[%22, %c0_12, %c0_13] : memref<8x4x16xf32, #tpu.memory_space<vmem>>, vector<1x4x16xf32>
    %24 = vector.shape_cast %23 : vector<1x4x16xf32> to vector<4x16xf32>
    %cst_14 = arith.constant dense<0.000000e+00> : vector<4x192xf32>
    %25 = tpu.matmul %24, %0, %cst_14 {dimension_numbers = #tpu.dot_dimension_numbers<[1], [0], [0], [1], [0, 0, 1, 1], [], []>} : vector<4x16xf32>, vector<16x192xf32>, vector<4x192xf32> -> vector<4x192xf32>
    %26 = vector.broadcast %1 : vector<1x192xf32> to vector<4x192xf32>
    %27 = arith.addf %25, %26 : vector<4x192xf32>
    %28 = arith.index_cast %c2_i32 : i32 to index
    %c0_15 = arith.constant 0 : index
    %c0_16 = arith.constant 0 : index
    %29 = vector.load %arg10[%28, %c0_15, %c0_16] : memref<8x4x192xf32, #tpu.memory_space<vmem>>, vector<1x4x192xf32>
    %30 = vector.shape_cast %29 : vector<1x4x192xf32> to vector<4x192xf32>
    %31 = vector.shape_cast %27 : vector<4x192xf32> to vector<1x4x192xf32>
    tpu.vector_store %arg10[%28, %c0_15, %c0_16], %31 {strides = array<i32>} : memref<8x4x192xf32, #tpu.memory_space<vmem>>, vector<1x4x192xf32>,
    %c3_i32 = arith.constant 3 : i32
    %32 = arith.index_cast %c3_i32 : i32 to index
    %c0_17 = arith.constant 0 : index
    %c0_18 = arith.constant 0 : index
    %33 = vector.load %arg0[%32, %c0_17, %c0_18] : memref<8x4x16xf32, #tpu.memory_space<vmem>>, vector<1x4x16xf32>
    %34 = vector.shape_cast %33 : vector<1x4x16xf32> to vector<4x16xf32>
    %cst_19 = arith.constant dense<0.000000e+00> : vector<4x192xf32>
    %35 = tpu.matmul %34, %0, %cst_19 {dimension_numbers = #tpu.dot_dimension_numbers<[1], [0], [0], [1], [0, 0, 1, 1], [], []>} : vector<4x16xf32>, vector<16x192xf32>, vector<4x192xf32> -> vector<4x192xf32>
    %36 = vector.broadcast %1 : vector<1x192xf32> to vector<4x192xf32>
    %37 = arith.addf %35, %36 : vector<4x192xf32>
    %38 = arith.index_cast %c3_i32 : i32 to index
    %c0_20 = arith.constant 0 : index
    %c0_21 = arith.constant 0 : index
    %39 = vector.load %arg10[%38, %c0_20, %c0_21] : memref<8x4x192xf32, #tpu.memory_space<vmem>>, vector<1x4x192xf32>
    %40 = vector.shape_cast %39 : vector<1x4x192xf32> to vector<4x192xf32>
    %41 = vector.shape_cast %37 : vector<4x192xf32> to vector<1x4x192xf32>
    tpu.vector_store %arg10[%38, %c0_20, %c0_21], %41 {strides = array<i32>} : memref<8x4x192xf32, #tpu.memory_space<vmem>>, vector<1x4x192xf32>,
    %c4_i32 = arith.constant 4 : i32
    %42 = arith.index_cast %c4_i32 : i32 to index
    %c0_22 = arith.constant 0 : index
    %c0_23 = arith.constant 0 : index
    %43 = vector.load %arg0[%42, %c0_22, %c0_23] : memref<8x4x16xf32, #tpu.memory_space<vmem>>, vector<1x4x16xf32>
    %44 = vector.shape_cast %43 : vector<1x4x16xf32> to vector<4x16xf32>
    %cst_24 = arith.constant dense<0.000000e+00> : vector<4x192xf32>
    %45 = tpu.matmul %44, %0, %cst_24 {dimension_numbers = #tpu.dot_dimension_numbers<[1], [0], [0], [1], [0, 0, 1, 1], [], []>} : vector<4x16xf32>, vector<16x192xf32>, vector<4x192xf32> -> vector<4x192xf32>
    %46 = vector.broadcast %1 : vector<1x192xf32> to vector<4x192xf32>
    %47 = arith.addf %45, %46 : vector<4x192xf32>
    %48 = arith.index_cast %c4_i32 : i32 to index
    %c0_25 = arith.constant 0 : index
    %c0_26 = arith.constant 0 : index
    %49 = vector.load %arg10[%48, %c0_25, %c0_26] : memref<8x4x192xf32, #tpu.memory_space<vmem>>, vector<1x4x192xf32>
    %50 = vector.shape_cast %49 : vector<1x4x192xf32> to vector<4x192xf32>
    %51 = vector.shape_cast %47 : vector<4x192xf32> to vector<1x4x192xf32>
    tpu.vector_store %arg10[%48, %c0_25, %c0_26], %51 {strides = array<i32>} : memref<8x4x192xf32, #tpu.memory_space<vmem>>, vector<1x4x192xf32>,
    %c5_i32 = arith.constant 5 : i32
    %52 = arith.index_cast %c5_i32 : i32 to index
    %c0_27 = arith.constant 0 : index
    %c0_28 = arith.constant 0 : index
    %53 = vector.load %arg0[%52, %c0_27, %c0_28] : memref<8x4x16xf32, #tpu.memory_space<vmem>>, vector<1x4x16xf32>
    %54 = vector.shape_cast %53 : vector<1x4x16xf32> to vector<4x16xf32>
    %cst_29 = arith.constant dense<0.000000e+00> : vector<4x192xf32>
    %55 = tpu.matmul %54, %0, %cst_29 {dimension_numbers = #tpu.dot_dimension_numbers<[1], [0], [0], [1], [0, 0, 1, 1], [], []>} : vector<4x16xf32>, vector<16x192xf32>, vector<4x192xf32> -> vector<4x192xf32>
    %56 = vector.broadcast %1 : vector<1x192xf32> to vector<4x192xf32>
    %57 = arith.addf %55, %56 : vector<4x192xf32>
    %58 = arith.index_cast %c5_i32 : i32 to index
    %c0_30 = arith.constant 0 : index
    %c0_31 = arith.constant 0 : index
    %59 = vector.load %arg10[%58, %c0_30, %c0_31] : memref<8x4x192xf32, #tpu.memory_space<vmem>>, vector<1x4x192xf32>
    %60 = vector.shape_cast %59 : vector<1x4x192xf32> to vector<4x192xf32>
    %61 = vector.shape_cast %57 : vector<4x192xf32> to vector<1x4x192xf32>
    tpu.vector_store %arg10[%58, %c0_30, %c0_31], %61 {strides = array<i32>} : memref<8x4x192xf32, #tpu.memory_space<vmem>>, vector<1x4x192xf32>,
    %c6_i32 = arith.constant 6 : i32
    %62 = arith.index_cast %c6_i32 : i32 to index
    %c0_32 = arith.constant 0 : index
    %c0_33 = arith.constant 0 : index
    %63 = vector.load %arg0[%62, %c0_32, %c0_33] : memref<8x4x16xf32, #tpu.memory_space<vmem>>, vector<1x4x16xf32>
    %64 = vector.shape_cast %63 : vector<1x4x16xf32> to vector<4x16xf32>
    %cst_34 = arith.constant dense<0.000000e+00> : vector<4x192xf32>
    %65 = tpu.matmul %64, %0, %cst_34 {dimension_numbers = #tpu.dot_dimension_numbers<[1], [0], [0], [1], [0, 0, 1, 1], [], []>} : vector<4x16xf32>, vector<16x192xf32>, vector<4x192xf32> -> vector<4x192xf32>
    %66 = vector.broadcast %1 : vector<1x192xf32> to vector<4x192xf32>
    %67 = arith.addf %65, %66 : vector<4x192xf32>
    %68 = arith.index_cast %c6_i32 : i32 to index
    %c0_35 = arith.constant 0 : index
    %c0_36 = arith.constant 0 : index
    %69 = vector.load %arg10[%68, %c0_35, %c0_36] : memref<8x4x192xf32, #tpu.memory_space<vmem>>, vector<1x4x192xf32>
    %70 = vector.shape_cast %69 : vector<1x4x192xf32> to vector<4x192xf32>
    %71 = vector.shape_cast %67 : vector<4x192xf32> to vector<1x4x192xf32>
    tpu.vector_store %arg10[%68, %c0_35, %c0_36], %71 {strides = array<i32>} : memref<8x4x192xf32, #tpu.memory_space<vmem>>, vector<1x4x192xf32>,
    %c7_i32 = arith.constant 7 : i32
    %72 = arith.index_cast %c7_i32 : i32 to index
    %c0_37 = arith.constant 0 : index
    %c0_38 = arith.constant 0 : index
    %73 = vector.load %arg0[%72, %c0_37, %c0_38] : memref<8x4x16xf32, #tpu.memory_space<vmem>>, vector<1x4x16xf32>
    %74 = vector.shape_cast %73 : vector<1x4x16xf32> to vector<4x16xf32>
    %cst_39 = arith.constant dense<0.000000e+00> : vector<4x192xf32>
    %75 = tpu.matmul %74, %0, %cst_39 {dimension_numbers = #tpu.dot_dimension_numbers<[1], [0], [0], [1], [0, 0, 1, 1], [], []>} : vector<4x16xf32>, vector<16x192xf32>, vector<4x192xf32> -> vector<4x192xf32>
    %76 = vector.broadcast %1 : vector<1x192xf32> to vector<4x192xf32>
    %77 = arith.addf %75, %76 : vector<4x192xf32>
    %78 = arith.index_cast %c7_i32 : i32 to index
    %c0_40 = arith.constant 0 : index
    %c0_41 = arith.constant 0 : index
    %79 = vector.load %arg10[%78, %c0_40, %c0_41] : memref<8x4x192xf32, #tpu.memory_space<vmem>>, vector<1x4x192xf32>
    %80 = vector.shape_cast %79 : vector<1x4x192xf32> to vector<4x192xf32>
    %81 = vector.shape_cast %77 : vector<4x192xf32> to vector<1x4x192xf32>
    tpu.vector_store %arg10[%78, %c0_40, %c0_41], %81 {strides = array<i32>} : memref<8x4x192xf32, #tpu.memory_space<vmem>>, vector<1x4x192xf32>,
    %c8_i32 = arith.constant 8 : i32
    %c0_42 = arith.constant 0 : index
    %c0_43 = arith.constant 0 : index
    %82 = vector.load %arg2[%c0_42, %c0_43] : memref<64x192xf32, #tpu.memory_space<vmem>>, vector<64x192xf32>
    %c0_44 = arith.constant 0 : index
    %c0_45 = arith.constant 0 : index
    %83 = vector.load %arg4[%c0_44, %c0_45] : memref<1x64xf32, #tpu.memory_space<vmem>>, vector<1x64xf32>
    %84 = vector.shape_cast %83 : vector<1x64xf32> to vector<1x64xf32>
    %85 = vector.broadcast %84 : vector<1x64xf32> to vector<4x64xf32>
    %c0_46 = arith.constant 0 : index
    %c0_47 = arith.constant 0 : index
    %86 = vector.load %arg5[%c0_46, %c0_47] : memref<1x192xf32, #tpu.memory_space<vmem>>, vector<1x192xf32>
    %cst_48 = arith.constant 5.000000e-01 : f32
    %87 = vector.broadcast %cst_48 : f32 to vector<1x192xf32>
    %88 = arith.cmpf ogt, %86, %87 : vector<1x192xf32>
    %89 = vector.shape_cast %88 : vector<1x192xi1> to vector<1x192xi1>
    %90 = vector.broadcast %89 : vector<1x192xi1> to vector<4x192xi1>
    %cst_49 = arith.constant 0.000000e+00 : f32
    %91 = vector.broadcast %cst_49 : f32 to vector<4x64xf32>
    %c0_i32_50 = arith.constant 0 : i32
    %c7_i32_51 = arith.constant 7 : i32
    %92 = arith.subi %c7_i32_51, %c0_i32_50 : i32
    %93 = arith.index_cast %c0_i32_50 : i32 to index
    %c0_52 = arith.constant 0 : index
    %c0_53 = arith.constant 0 : index
    %94 = vector.load %arg10[%93, %c0_52, %c0_53] : memref<8x4x192xf32, #tpu.memory_space<vmem>>, vector<1x4x192xf32>
    %95 = vector.shape_cast %94 : vector<1x4x192xf32> to vector<4x192xf32>
    %96 = arith.index_cast %92 : i32 to index
    %c0_54 = arith.constant 0 : index
    %c0_55 = arith.constant 0 : index
    %97 = vector.load %arg10[%96, %c0_54, %c0_55] : memref<8x4x192xf32, #tpu.memory_space<vmem>>, vector<1x4x192xf32>
    %98 = vector.shape_cast %97 : vector<1x4x192xf32> to vector<4x192xf32>
    %99 = arith.select %90, %95, %98 : vector<4x192xi1>, vector<4x192xf32>
    %cst_56 = arith.constant dense<0.000000e+00> : vector<4x192xf32>
    %100 = tpu.matmul %91, %82, %cst_56 {dimension_numbers = #tpu.dot_dimension_numbers<[1], [0], [0], [1], [0, 0, 1, 1], [], []>} : vector<4x64xf32>, vector<64x192xf32>, vector<4x192xf32> -> vector<4x192xf32>
    %101 = vector.extract_strided_slice %99 {offsets = [0, 0], sizes = [4, 128], strides = [1, 1]} : vector<4x192xf32> to vector<4x128xf32>
    %102 = vector.extract_strided_slice %100 {offsets = [0, 0], sizes = [4, 128], strides = [1, 1]} : vector<4x192xf32> to vector<4x128xf32>
    %103 = arith.addf %101, %102 : vector<4x128xf32>
    %104 = arith.negf %103 : vector<4x128xf32>
    %105 = math.exp %104 : vector<4x128xf32>
    %cst_57 = arith.constant 1.000000e+00 : f32
    %106 = vector.broadcast %cst_57 : f32 to vector<4x128xf32>
    %107 = arith.addf %106, %105 : vector<4x128xf32>
    %108 = arith.divf %106, %107 : vector<4x128xf32>
    %109 = vector.extract_strided_slice %108 {offsets = [0, 0], sizes = [4, 64], strides = [1, 1]} : vector<4x128xf32> to vector<4x64xf32>
    %110 = vector.extract_strided_slice %108 {offsets = [0, 64], sizes = [4, 64], strides = [1, 1]} : vector<4x128xf32> to vector<4x64xf32>
    %111 = vector.extract_strided_slice %99 {offsets = [0, 128], sizes = [4, 64], strides = [1, 1]} : vector<4x192xf32> to vector<4x64xf32>
    %112 = vector.extract_strided_slice %100 {offsets = [0, 128], sizes = [4, 64], strides = [1, 1]} : vector<4x192xf32> to vector<4x64xf32>
    %113 = arith.addf %112, %85 : vector<4x64xf32>
    %114 = arith.mulf %109, %113 : vector<4x64xf32>
    %115 = arith.addf %111, %114 : vector<4x64xf32>
    %116 = math.tanh %115 : vector<4x64xf32>
    %cst_58 = arith.constant 1.000000e+00 : f32
    %117 = vector.broadcast %cst_58 : f32 to vector<4x64xf32>
    %118 = arith.subf %117, %110 : vector<4x64xf32>
    %119 = arith.mulf %118, %116 : vector<4x64xf32>
    %120 = arith.mulf %110, %91 : vector<4x64xf32>
    %121 = arith.addf %119, %120 : vector<4x64xf32>
    %122 = vector.extract_strided_slice %121 {offsets = [0, 0], sizes = [4, 32], strides = [1, 1]} : vector<4x64xf32> to vector<4x32xf32>
    %123 = arith.index_cast %c0_i32_50 : i32 to index
    %c0_59 = arith.constant 0 : index
    %c0_60 = arith.constant 0 : index
    %124 = vector.load %arg8[%123, %c0_59, %c0_60] : memref<8x4x64xf32, #tpu.memory_space<vmem>>, vector<1x4x32xf32>
    %125 = vector.shape_cast %124 : vector<1x4x32xf32> to vector<4x32xf32>
    %126 = vector.shape_cast %122 : vector<4x32xf32> to vector<1x4x32xf32>
    tpu.vector_store %arg8[%123, %c0_59, %c0_60], %126 {strides = array<i32>} : memref<8x4x64xf32, #tpu.memory_space<vmem>>, vector<1x4x32xf32>,
    %127 = vector.extract_strided_slice %121 {offsets = [0, 32], sizes = [4, 32], strides = [1, 1]} : vector<4x64xf32> to vector<4x32xf32>
    %128 = arith.index_cast %92 : i32 to index
    %c0_61 = arith.constant 0 : index
    %c32 = arith.constant 32 : index
    %129 = vector.load %arg8[%128, %c0_61, %c32] : memref<8x4x64xf32, #tpu.memory_space<vmem>>, vector<1x4x32xf32>
    %130 = vector.shape_cast %129 : vector<1x4x32xf32> to vector<4x32xf32>
    %131 = vector.shape_cast %127 : vector<4x32xf32> to vector<1x4x32xf32>
    tpu.vector_store %arg8[%128, %c0_61, %c32], %131 {strides = array<i32>} : memref<8x4x64xf32, #tpu.memory_space<vmem>>, vector<1x4x32xf32>,
    %c1_i32_62 = arith.constant 1 : i32
    %c7_i32_63 = arith.constant 7 : i32
    %132 = arith.subi %c7_i32_63, %c1_i32_62 : i32
    %133 = arith.index_cast %c1_i32_62 : i32 to index
    %c0_64 = arith.constant 0 : index
    %c0_65 = arith.constant 0 : index
    %134 = vector.load %arg10[%133, %c0_64, %c0_65] : memref<8x4x192xf32, #tpu.memory_space<vmem>>, vector<1x4x192xf32>
    %135 = vector.shape_cast %134 : vector<1x4x192xf32> to vector<4x192xf32>
    %136 = arith.index_cast %132 : i32 to index
    %c0_66 = arith.constant 0 : index
    %c0_67 = arith.constant 0 : index
    %137 = vector.load %arg10[%136, %c0_66, %c0_67] : memref<8x4x192xf32, #tpu.memory_space<vmem>>, vector<1x4x192xf32>
    %138 = vector.shape_cast %137 : vector<1x4x192xf32> to vector<4x192xf32>
    %139 = arith.select %90, %135, %138 : vector<4x192xi1>, vector<4x192xf32>
    %cst_68 = arith.constant dense<0.000000e+00> : vector<4x192xf32>
    %140 = tpu.matmul %121, %82, %cst_68 {dimension_numbers = #tpu.dot_dimension_numbers<[1], [0], [0], [1], [0, 0, 1, 1], [], []>} : vector<4x64xf32>, vector<64x192xf32>, vector<4x192xf32> -> vector<4x192xf32>
    %141 = vector.extract_strided_slice %139 {offsets = [0, 0], sizes = [4, 128], strides = [1, 1]} : vector<4x192xf32> to vector<4x128xf32>
    %142 = vector.extract_strided_slice %140 {offsets = [0, 0], sizes = [4, 128], strides = [1, 1]} : vector<4x192xf32> to vector<4x128xf32>
    %143 = arith.addf %141, %142 : vector<4x128xf32>
    %144 = arith.negf %143 : vector<4x128xf32>
    %145 = math.exp %144 : vector<4x128xf32>
    %cst_69 = arith.constant 1.000000e+00 : f32
    %146 = vector.broadcast %cst_69 : f32 to vector<4x128xf32>
    %147 = arith.addf %146, %145 : vector<4x128xf32>
    %148 = arith.divf %146, %147 : vector<4x128xf32>
    %149 = vector.extract_strided_slice %148 {offsets = [0, 0], sizes = [4, 64], strides = [1, 1]} : vector<4x128xf32> to vector<4x64xf32>
    %150 = vector.extract_strided_slice %148 {offsets = [0, 64], sizes = [4, 64], strides = [1, 1]} : vector<4x128xf32> to vector<4x64xf32>
    %151 = vector.extract_strided_slice %139 {offsets = [0, 128], sizes = [4, 64], strides = [1, 1]} : vector<4x192xf32> to vector<4x64xf32>
    %152 = vector.extract_strided_slice %140 {offsets = [0, 128], sizes = [4, 64], strides = [1, 1]} : vector<4x192xf32> to vector<4x64xf32>
    %153 = arith.addf %152, %85 : vector<4x64xf32>
    %154 = arith.mulf %149, %153 : vector<4x64xf32>
    %155 = arith.addf %151, %154 : vector<4x64xf32>
    %156 = math.tanh %155 : vector<4x64xf32>
    %cst_70 = arith.constant 1.000000e+00 : f32
    %157 = vector.broadcast %cst_70 : f32 to vector<4x64xf32>
    %158 = arith.subf %157, %150 : vector<4x64xf32>
    %159 = arith.mulf %158, %156 : vector<4x64xf32>
    %160 = arith.mulf %150, %121 : vector<4x64xf32>
    %161 = arith.addf %159, %160 : vector<4x64xf32>
    %162 = vector.extract_strided_slice %161 {offsets = [0, 0], sizes = [4, 32], strides = [1, 1]} : vector<4x64xf32> to vector<4x32xf32>
    %163 = arith.index_cast %c1_i32_62 : i32 to index
    %c0_71 = arith.constant 0 : index
    %c0_72 = arith.constant 0 : index
    %164 = vector.load %arg8[%163, %c0_71, %c0_72] : memref<8x4x64xf32, #tpu.memory_space<vmem>>, vector<1x4x32xf32>
    %165 = vector.shape_cast %164 : vector<1x4x32xf32> to vector<4x32xf32>
    %166 = vector.shape_cast %162 : vector<4x32xf32> to vector<1x4x32xf32>
    tpu.vector_store %arg8[%163, %c0_71, %c0_72], %166 {strides = array<i32>} : memref<8x4x64xf32, #tpu.memory_space<vmem>>, vector<1x4x32xf32>,
    %167 = vector.extract_strided_slice %161 {offsets = [0, 32], sizes = [4, 32], strides = [1, 1]} : vector<4x64xf32> to vector<4x32xf32>
    %168 = arith.index_cast %132 : i32 to index
    %c0_73 = arith.constant 0 : index
    %c32_74 = arith.constant 32 : index
    %169 = vector.load %arg8[%168, %c0_73, %c32_74] : memref<8x4x64xf32, #tpu.memory_space<vmem>>, vector<1x4x32xf32>
    %170 = vector.shape_cast %169 : vector<1x4x32xf32> to vector<4x32xf32>
    %171 = vector.shape_cast %167 : vector<4x32xf32> to vector<1x4x32xf32>
    tpu.vector_store %arg8[%168, %c0_73, %c32_74], %171 {strides = array<i32>} : memref<8x4x64xf32, #tpu.memory_space<vmem>>, vector<1x4x32xf32>,
    %c2_i32_75 = arith.constant 2 : i32
    %c7_i32_76 = arith.constant 7 : i32
    %172 = arith.subi %c7_i32_76, %c2_i32_75 : i32
    %173 = arith.index_cast %c2_i32_75 : i32 to index
    %c0_77 = arith.constant 0 : index
    %c0_78 = arith.constant 0 : index
    %174 = vector.load %arg10[%173, %c0_77, %c0_78] : memref<8x4x192xf32, #tpu.memory_space<vmem>>, vector<1x4x192xf32>
    %175 = vector.shape_cast %174 : vector<1x4x192xf32> to vector<4x192xf32>
    %176 = arith.index_cast %172 : i32 to index
    %c0_79 = arith.constant 0 : index
    %c0_80 = arith.constant 0 : index
    %177 = vector.load %arg10[%176, %c0_79, %c0_80] : memref<8x4x192xf32, #tpu.memory_space<vmem>>, vector<1x4x192xf32>
    %178 = vector.shape_cast %177 : vector<1x4x192xf32> to vector<4x192xf32>
    %179 = arith.select %90, %175, %178 : vector<4x192xi1>, vector<4x192xf32>
    %cst_81 = arith.constant dense<0.000000e+00> : vector<4x192xf32>
    %180 = tpu.matmul %161, %82, %cst_81 {dimension_numbers = #tpu.dot_dimension_numbers<[1], [0], [0], [1], [0, 0, 1, 1], [], []>} : vector<4x64xf32>, vector<64x192xf32>, vector<4x192xf32> -> vector<4x192xf32>
    %181 = vector.extract_strided_slice %179 {offsets = [0, 0], sizes = [4, 128], strides = [1, 1]} : vector<4x192xf32> to vector<4x128xf32>
    %182 = vector.extract_strided_slice %180 {offsets = [0, 0], sizes = [4, 128], strides = [1, 1]} : vector<4x192xf32> to vector<4x128xf32>
    %183 = arith.addf %181, %182 : vector<4x128xf32>
    %184 = arith.negf %183 : vector<4x128xf32>
    %185 = math.exp %184 : vector<4x128xf32>
    %cst_82 = arith.constant 1.000000e+00 : f32
    %186 = vector.broadcast %cst_82 : f32 to vector<4x128xf32>
    %187 = arith.addf %186, %185 : vector<4x128xf32>
    %188 = arith.divf %186, %187 : vector<4x128xf32>
    %189 = vector.extract_strided_slice %188 {offsets = [0, 0], sizes = [4, 64], strides = [1, 1]} : vector<4x128xf32> to vector<4x64xf32>
    %190 = vector.extract_strided_slice %188 {offsets = [0, 64], sizes = [4, 64], strides = [1, 1]} : vector<4x128xf32> to vector<4x64xf32>
    %191 = vector.extract_strided_slice %179 {offsets = [0, 128], sizes = [4, 64], strides = [1, 1]} : vector<4x192xf32> to vector<4x64xf32>
    %192 = vector.extract_strided_slice %180 {offsets = [0, 128], sizes = [4, 64], strides = [1, 1]} : vector<4x192xf32> to vector<4x64xf32>
    %193 = arith.addf %192, %85 : vector<4x64xf32>
    %194 = arith.mulf %189, %193 : vector<4x64xf32>
    %195 = arith.addf %191, %194 : vector<4x64xf32>
    %196 = math.tanh %195 : vector<4x64xf32>
    %cst_83 = arith.constant 1.000000e+00 : f32
    %197 = vector.broadcast %cst_83 : f32 to vector<4x64xf32>
    %198 = arith.subf %197, %190 : vector<4x64xf32>
    %199 = arith.mulf %198, %196 : vector<4x64xf32>
    %200 = arith.mulf %190, %161 : vector<4x64xf32>
    %201 = arith.addf %199, %200 : vector<4x64xf32>
    %202 = vector.extract_strided_slice %201 {offsets = [0, 0], sizes = [4, 32], strides = [1, 1]} : vector<4x64xf32> to vector<4x32xf32>
    %203 = arith.index_cast %c2_i32_75 : i32 to index
    %c0_84 = arith.constant 0 : index
    %c0_85 = arith.constant 0 : index
    %204 = vector.load %arg8[%203, %c0_84, %c0_85] : memref<8x4x64xf32, #tpu.memory_space<vmem>>, vector<1x4x32xf32>
    %205 = vector.shape_cast %204 : vector<1x4x32xf32> to vector<4x32xf32>
    %206 = vector.shape_cast %202 : vector<4x32xf32> to vector<1x4x32xf32>
    tpu.vector_store %arg8[%203, %c0_84, %c0_85], %206 {strides = array<i32>} : memref<8x4x64xf32, #tpu.memory_space<vmem>>, vector<1x4x32xf32>,
    %207 = vector.extract_strided_slice %201 {offsets = [0, 32], sizes = [4, 32], strides = [1, 1]} : vector<4x64xf32> to vector<4x32xf32>
    %208 = arith.index_cast %172 : i32 to index
    %c0_86 = arith.constant 0 : index
    %c32_87 = arith.constant 32 : index
    %209 = vector.load %arg8[%208, %c0_86, %c32_87] : memref<8x4x64xf32, #tpu.memory_space<vmem>>, vector<1x4x32xf32>
    %210 = vector.shape_cast %209 : vector<1x4x32xf32> to vector<4x32xf32>
    %211 = vector.shape_cast %207 : vector<4x32xf32> to vector<1x4x32xf32>
    tpu.vector_store %arg8[%208, %c0_86, %c32_87], %211 {strides = array<i32>} : memref<8x4x64xf32, #tpu.memory_space<vmem>>, vector<1x4x32xf32>,
    %c3_i32_88 = arith.constant 3 : i32
    %c7_i32_89 = arith.constant 7 : i32
    %212 = arith.subi %c7_i32_89, %c3_i32_88 : i32
    %213 = arith.index_cast %c3_i32_88 : i32 to index
    %c0_90 = arith.constant 0 : index
    %c0_91 = arith.constant 0 : index
    %214 = vector.load %arg10[%213, %c0_90, %c0_91] : memref<8x4x192xf32, #tpu.memory_space<vmem>>, vector<1x4x192xf32>
    %215 = vector.shape_cast %214 : vector<1x4x192xf32> to vector<4x192xf32>
    %216 = arith.index_cast %212 : i32 to index
    %c0_92 = arith.constant 0 : index
    %c0_93 = arith.constant 0 : index
    %217 = vector.load %arg10[%216, %c0_92, %c0_93] : memref<8x4x192xf32, #tpu.memory_space<vmem>>, vector<1x4x192xf32>
    %218 = vector.shape_cast %217 : vector<1x4x192xf32> to vector<4x192xf32>
    %219 = arith.select %90, %215, %218 : vector<4x192xi1>, vector<4x192xf32>
    %cst_94 = arith.constant dense<0.000000e+00> : vector<4x192xf32>
    %220 = tpu.matmul %201, %82, %cst_94 {dimension_numbers = #tpu.dot_dimension_numbers<[1], [0], [0], [1], [0, 0, 1, 1], [], []>} : vector<4x64xf32>, vector<64x192xf32>, vector<4x192xf32> -> vector<4x192xf32>
    %221 = vector.extract_strided_slice %219 {offsets = [0, 0], sizes = [4, 128], strides = [1, 1]} : vector<4x192xf32> to vector<4x128xf32>
    %222 = vector.extract_strided_slice %220 {offsets = [0, 0], sizes = [4, 128], strides = [1, 1]} : vector<4x192xf32> to vector<4x128xf32>
    %223 = arith.addf %221, %222 : vector<4x128xf32>
    %224 = arith.negf %223 : vector<4x128xf32>
    %225 = math.exp %224 : vector<4x128xf32>
    %cst_95 = arith.constant 1.000000e+00 : f32
    %226 = vector.broadcast %cst_95 : f32 to vector<4x128xf32>
    %227 = arith.addf %226, %225 : vector<4x128xf32>
    %228 = arith.divf %226, %227 : vector<4x128xf32>
    %229 = vector.extract_strided_slice %228 {offsets = [0, 0], sizes = [4, 64], strides = [1, 1]} : vector<4x128xf32> to vector<4x64xf32>
    %230 = vector.extract_strided_slice %228 {offsets = [0, 64], sizes = [4, 64], strides = [1, 1]} : vector<4x128xf32> to vector<4x64xf32>
    %231 = vector.extract_strided_slice %219 {offsets = [0, 128], sizes = [4, 64], strides = [1, 1]} : vector<4x192xf32> to vector<4x64xf32>
    %232 = vector.extract_strided_slice %220 {offsets = [0, 128], sizes = [4, 64], strides = [1, 1]} : vector<4x192xf32> to vector<4x64xf32>
    %233 = arith.addf %232, %85 : vector<4x64xf32>
    %234 = arith.mulf %229, %233 : vector<4x64xf32>
    %235 = arith.addf %231, %234 : vector<4x64xf32>
    %236 = math.tanh %235 : vector<4x64xf32>
    %cst_96 = arith.constant 1.000000e+00 : f32
    %237 = vector.broadcast %cst_96 : f32 to vector<4x64xf32>
    %238 = arith.subf %237, %230 : vector<4x64xf32>
    %239 = arith.mulf %238, %236 : vector<4x64xf32>
    %240 = arith.mulf %230, %201 : vector<4x64xf32>
    %241 = arith.addf %239, %240 : vector<4x64xf32>
    %242 = vector.extract_strided_slice %241 {offsets = [0, 0], sizes = [4, 32], strides = [1, 1]} : vector<4x64xf32> to vector<4x32xf32>
    %243 = arith.index_cast %c3_i32_88 : i32 to index
    %c0_97 = arith.constant 0 : index
    %c0_98 = arith.constant 0 : index
    %244 = vector.load %arg8[%243, %c0_97, %c0_98] : memref<8x4x64xf32, #tpu.memory_space<vmem>>, vector<1x4x32xf32>
    %245 = vector.shape_cast %244 : vector<1x4x32xf32> to vector<4x32xf32>
    %246 = vector.shape_cast %242 : vector<4x32xf32> to vector<1x4x32xf32>
    tpu.vector_store %arg8[%243, %c0_97, %c0_98], %246 {strides = array<i32>} : memref<8x4x64xf32, #tpu.memory_space<vmem>>, vector<1x4x32xf32>,
    %247 = vector.extract_strided_slice %241 {offsets = [0, 32], sizes = [4, 32], strides = [1, 1]} : vector<4x64xf32> to vector<4x32xf32>
    %248 = arith.index_cast %212 : i32 to index
    %c0_99 = arith.constant 0 : index
    %c32_100 = arith.constant 32 : index
    %249 = vector.load %arg8[%248, %c0_99, %c32_100] : memref<8x4x64xf32, #tpu.memory_space<vmem>>, vector<1x4x32xf32>
    %250 = vector.shape_cast %249 : vector<1x4x32xf32> to vector<4x32xf32>
    %251 = vector.shape_cast %247 : vector<4x32xf32> to vector<1x4x32xf32>
    tpu.vector_store %arg8[%248, %c0_99, %c32_100], %251 {strides = array<i32>} : memref<8x4x64xf32, #tpu.memory_space<vmem>>, vector<1x4x32xf32>,
    %c4_i32_101 = arith.constant 4 : i32
    %c7_i32_102 = arith.constant 7 : i32
    %252 = arith.subi %c7_i32_102, %c4_i32_101 : i32
    %253 = arith.index_cast %c4_i32_101 : i32 to index
    %c0_103 = arith.constant 0 : index
    %c0_104 = arith.constant 0 : index
    %254 = vector.load %arg10[%253, %c0_103, %c0_104] : memref<8x4x192xf32, #tpu.memory_space<vmem>>, vector<1x4x192xf32>
    %255 = vector.shape_cast %254 : vector<1x4x192xf32> to vector<4x192xf32>
    %256 = arith.index_cast %252 : i32 to index
    %c0_105 = arith.constant 0 : index
    %c0_106 = arith.constant 0 : index
    %257 = vector.load %arg10[%256, %c0_105, %c0_106] : memref<8x4x192xf32, #tpu.memory_space<vmem>>, vector<1x4x192xf32>
    %258 = vector.shape_cast %257 : vector<1x4x192xf32> to vector<4x192xf32>
    %259 = arith.select %90, %255, %258 : vector<4x192xi1>, vector<4x192xf32>
    %cst_107 = arith.constant dense<0.000000e+00> : vector<4x192xf32>
    %260 = tpu.matmul %241, %82, %cst_107 {dimension_numbers = #tpu.dot_dimension_numbers<[1], [0], [0], [1], [0, 0, 1, 1], [], []>} : vector<4x64xf32>, vector<64x192xf32>, vector<4x192xf32> -> vector<4x192xf32>
    %261 = vector.extract_strided_slice %259 {offsets = [0, 0], sizes = [4, 128], strides = [1, 1]} : vector<4x192xf32> to vector<4x128xf32>
    %262 = vector.extract_strided_slice %260 {offsets = [0, 0], sizes = [4, 128], strides = [1, 1]} : vector<4x192xf32> to vector<4x128xf32>
    %263 = arith.addf %261, %262 : vector<4x128xf32>
    %264 = arith.negf %263 : vector<4x128xf32>
    %265 = math.exp %264 : vector<4x128xf32>
    %cst_108 = arith.constant 1.000000e+00 : f32
    %266 = vector.broadcast %cst_108 : f32 to vector<4x128xf32>
    %267 = arith.addf %266, %265 : vector<4x128xf32>
    %268 = arith.divf %266, %267 : vector<4x128xf32>
    %269 = vector.extract_strided_slice %268 {offsets = [0, 0], sizes = [4, 64], strides = [1, 1]} : vector<4x128xf32> to vector<4x64xf32>
    %270 = vector.extract_strided_slice %268 {offsets = [0, 64], sizes = [4, 64], strides = [1, 1]} : vector<4x128xf32> to vector<4x64xf32>
    %271 = vector.extract_strided_slice %259 {offsets = [0, 128], sizes = [4, 64], strides = [1, 1]} : vector<4x192xf32> to vector<4x64xf32>
    %272 = vector.extract_strided_slice %260 {offsets = [0, 128], sizes = [4, 64], strides = [1, 1]} : vector<4x192xf32> to vector<4x64xf32>
    %273 = arith.addf %272, %85 : vector<4x64xf32>
    %274 = arith.mulf %269, %273 : vector<4x64xf32>
    %275 = arith.addf %271, %274 : vector<4x64xf32>
    %276 = math.tanh %275 : vector<4x64xf32>
    %cst_109 = arith.constant 1.000000e+00 : f32
    %277 = vector.broadcast %cst_109 : f32 to vector<4x64xf32>
    %278 = arith.subf %277, %270 : vector<4x64xf32>
    %279 = arith.mulf %278, %276 : vector<4x64xf32>
    %280 = arith.mulf %270, %241 : vector<4x64xf32>
    %281 = arith.addf %279, %280 : vector<4x64xf32>
    %282 = vector.extract_strided_slice %281 {offsets = [0, 0], sizes = [4, 32], strides = [1, 1]} : vector<4x64xf32> to vector<4x32xf32>
    %283 = arith.index_cast %c4_i32_101 : i32 to index
    %c0_110 = arith.constant 0 : index
    %c0_111 = arith.constant 0 : index
    %284 = vector.load %arg8[%283, %c0_110, %c0_111] : memref<8x4x64xf32, #tpu.memory_space<vmem>>, vector<1x4x32xf32>
    %285 = vector.shape_cast %284 : vector<1x4x32xf32> to vector<4x32xf32>
    %286 = vector.shape_cast %282 : vector<4x32xf32> to vector<1x4x32xf32>
    tpu.vector_store %arg8[%283, %c0_110, %c0_111], %286 {strides = array<i32>} : memref<8x4x64xf32, #tpu.memory_space<vmem>>, vector<1x4x32xf32>,
    %287 = vector.extract_strided_slice %281 {offsets = [0, 32], sizes = [4, 32], strides = [1, 1]} : vector<4x64xf32> to vector<4x32xf32>
    %288 = arith.index_cast %252 : i32 to index
    %c0_112 = arith.constant 0 : index
    %c32_113 = arith.constant 32 : index
    %289 = vector.load %arg8[%288, %c0_112, %c32_113] : memref<8x4x64xf32, #tpu.memory_space<vmem>>, vector<1x4x32xf32>
    %290 = vector.shape_cast %289 : vector<1x4x32xf32> to vector<4x32xf32>
    %291 = vector.shape_cast %287 : vector<4x32xf32> to vector<1x4x32xf32>
    tpu.vector_store %arg8[%288, %c0_112, %c32_113], %291 {strides = array<i32>} : memref<8x4x64xf32, #tpu.memory_space<vmem>>, vector<1x4x32xf32>,
    %c5_i32_114 = arith.constant 5 : i32
    %c7_i32_115 = arith.constant 7 : i32
    %292 = arith.subi %c7_i32_115, %c5_i32_114 : i32
    %293 = arith.index_cast %c5_i32_114 : i32 to index
    %c0_116 = arith.constant 0 : index
    %c0_117 = arith.constant 0 : index
    %294 = vector.load %arg10[%293, %c0_116, %c0_117] : memref<8x4x192xf32, #tpu.memory_space<vmem>>, vector<1x4x192xf32>
    %295 = vector.shape_cast %294 : vector<1x4x192xf32> to vector<4x192xf32>
    %296 = arith.index_cast %292 : i32 to index
    %c0_118 = arith.constant 0 : index
    %c0_119 = arith.constant 0 : index
    %297 = vector.load %arg10[%296, %c0_118, %c0_119] : memref<8x4x192xf32, #tpu.memory_space<vmem>>, vector<1x4x192xf32>
    %298 = vector.shape_cast %297 : vector<1x4x192xf32> to vector<4x192xf32>
    %299 = arith.select %90, %295, %298 : vector<4x192xi1>, vector<4x192xf32>
    %cst_120 = arith.constant dense<0.000000e+00> : vector<4x192xf32>
    %300 = tpu.matmul %281, %82, %cst_120 {dimension_numbers = #tpu.dot_dimension_numbers<[1], [0], [0], [1], [0, 0, 1, 1], [], []>} : vector<4x64xf32>, vector<64x192xf32>, vector<4x192xf32> -> vector<4x192xf32>
    %301 = vector.extract_strided_slice %299 {offsets = [0, 0], sizes = [4, 128], strides = [1, 1]} : vector<4x192xf32> to vector<4x128xf32>
    %302 = vector.extract_strided_slice %300 {offsets = [0, 0], sizes = [4, 128], strides = [1, 1]} : vector<4x192xf32> to vector<4x128xf32>
    %303 = arith.addf %301, %302 : vector<4x128xf32>
    %304 = arith.negf %303 : vector<4x128xf32>
    %305 = math.exp %304 : vector<4x128xf32>
    %cst_121 = arith.constant 1.000000e+00 : f32
    %306 = vector.broadcast %cst_121 : f32 to vector<4x128xf32>
    %307 = arith.addf %306, %305 : vector<4x128xf32>
    %308 = arith.divf %306, %307 : vector<4x128xf32>
    %309 = vector.extract_strided_slice %308 {offsets = [0, 0], sizes = [4, 64], strides = [1, 1]} : vector<4x128xf32> to vector<4x64xf32>
    %310 = vector.extract_strided_slice %308 {offsets = [0, 64], sizes = [4, 64], strides = [1, 1]} : vector<4x128xf32> to vector<4x64xf32>
    %311 = vector.extract_strided_slice %299 {offsets = [0, 128], sizes = [4, 64], strides = [1, 1]} : vector<4x192xf32> to vector<4x64xf32>
    %312 = vector.extract_strided_slice %300 {offsets = [0, 128], sizes = [4, 64], strides = [1, 1]} : vector<4x192xf32> to vector<4x64xf32>
    %313 = arith.addf %312, %85 : vector<4x64xf32>
    %314 = arith.mulf %309, %313 : vector<4x64xf32>
    %315 = arith.addf %311, %314 : vector<4x64xf32>
    %316 = math.tanh %315 : vector<4x64xf32>
    %cst_122 = arith.constant 1.000000e+00 : f32
    %317 = vector.broadcast %cst_122 : f32 to vector<4x64xf32>
    %318 = arith.subf %317, %310 : vector<4x64xf32>
    %319 = arith.mulf %318, %316 : vector<4x64xf32>
    %320 = arith.mulf %310, %281 : vector<4x64xf32>
    %321 = arith.addf %319, %320 : vector<4x64xf32>
    %322 = vector.extract_strided_slice %321 {offsets = [0, 0], sizes = [4, 32], strides = [1, 1]} : vector<4x64xf32> to vector<4x32xf32>
    %323 = arith.index_cast %c5_i32_114 : i32 to index
    %c0_123 = arith.constant 0 : index
    %c0_124 = arith.constant 0 : index
    %324 = vector.load %arg8[%323, %c0_123, %c0_124] : memref<8x4x64xf32, #tpu.memory_space<vmem>>, vector<1x4x32xf32>
    %325 = vector.shape_cast %324 : vector<1x4x32xf32> to vector<4x32xf32>
    %326 = vector.shape_cast %322 : vector<4x32xf32> to vector<1x4x32xf32>
    tpu.vector_store %arg8[%323, %c0_123, %c0_124], %326 {strides = array<i32>} : memref<8x4x64xf32, #tpu.memory_space<vmem>>, vector<1x4x32xf32>,
    %327 = vector.extract_strided_slice %321 {offsets = [0, 32], sizes = [4, 32], strides = [1, 1]} : vector<4x64xf32> to vector<4x32xf32>
    %328 = arith.index_cast %292 : i32 to index
    %c0_125 = arith.constant 0 : index
    %c32_126 = arith.constant 32 : index
    %329 = vector.load %arg8[%328, %c0_125, %c32_126] : memref<8x4x64xf32, #tpu.memory_space<vmem>>, vector<1x4x32xf32>
    %330 = vector.shape_cast %329 : vector<1x4x32xf32> to vector<4x32xf32>
    %331 = vector.shape_cast %327 : vector<4x32xf32> to vector<1x4x32xf32>
    tpu.vector_store %arg8[%328, %c0_125, %c32_126], %331 {strides = array<i32>} : memref<8x4x64xf32, #tpu.memory_space<vmem>>, vector<1x4x32xf32>,
    %c6_i32_127 = arith.constant 6 : i32
    %c7_i32_128 = arith.constant 7 : i32
    %332 = arith.subi %c7_i32_128, %c6_i32_127 : i32
    %333 = arith.index_cast %c6_i32_127 : i32 to index
    %c0_129 = arith.constant 0 : index
    %c0_130 = arith.constant 0 : index
    %334 = vector.load %arg10[%333, %c0_129, %c0_130] : memref<8x4x192xf32, #tpu.memory_space<vmem>>, vector<1x4x192xf32>
    %335 = vector.shape_cast %334 : vector<1x4x192xf32> to vector<4x192xf32>
    %336 = arith.index_cast %332 : i32 to index
    %c0_131 = arith.constant 0 : index
    %c0_132 = arith.constant 0 : index
    %337 = vector.load %arg10[%336, %c0_131, %c0_132] : memref<8x4x192xf32, #tpu.memory_space<vmem>>, vector<1x4x192xf32>
    %338 = vector.shape_cast %337 : vector<1x4x192xf32> to vector<4x192xf32>
    %339 = arith.select %90, %335, %338 : vector<4x192xi1>, vector<4x192xf32>
    %cst_133 = arith.constant dense<0.000000e+00> : vector<4x192xf32>
    %340 = tpu.matmul %321, %82, %cst_133 {dimension_numbers = #tpu.dot_dimension_numbers<[1], [0], [0], [1], [0, 0, 1, 1], [], []>} : vector<4x64xf32>, vector<64x192xf32>, vector<4x192xf32> -> vector<4x192xf32>
    %341 = vector.extract_strided_slice %339 {offsets = [0, 0], sizes = [4, 128], strides = [1, 1]} : vector<4x192xf32> to vector<4x128xf32>
    %342 = vector.extract_strided_slice %340 {offsets = [0, 0], sizes = [4, 128], strides = [1, 1]} : vector<4x192xf32> to vector<4x128xf32>
    %343 = arith.addf %341, %342 : vector<4x128xf32>
    %344 = arith.negf %343 : vector<4x128xf32>
    %345 = math.exp %344 : vector<4x128xf32>
    %cst_134 = arith.constant 1.000000e+00 : f32
    %346 = vector.broadcast %cst_134 : f32 to vector<4x128xf32>
    %347 = arith.addf %346, %345 : vector<4x128xf32>
    %348 = arith.divf %346, %347 : vector<4x128xf32>
    %349 = vector.extract_strided_slice %348 {offsets = [0, 0], sizes = [4, 64], strides = [1, 1]} : vector<4x128xf32> to vector<4x64xf32>
    %350 = vector.extract_strided_slice %348 {offsets = [0, 64], sizes = [4, 64], strides = [1, 1]} : vector<4x128xf32> to vector<4x64xf32>
    %351 = vector.extract_strided_slice %339 {offsets = [0, 128], sizes = [4, 64], strides = [1, 1]} : vector<4x192xf32> to vector<4x64xf32>
    %352 = vector.extract_strided_slice %340 {offsets = [0, 128], sizes = [4, 64], strides = [1, 1]} : vector<4x192xf32> to vector<4x64xf32>
    %353 = arith.addf %352, %85 : vector<4x64xf32>
    %354 = arith.mulf %349, %353 : vector<4x64xf32>
    %355 = arith.addf %351, %354 : vector<4x64xf32>
    %356 = math.tanh %355 : vector<4x64xf32>
    %cst_135 = arith.constant 1.000000e+00 : f32
    %357 = vector.broadcast %cst_135 : f32 to vector<4x64xf32>
    %358 = arith.subf %357, %350 : vector<4x64xf32>
    %359 = arith.mulf %358, %356 : vector<4x64xf32>
    %360 = arith.mulf %350, %321 : vector<4x64xf32>
    %361 = arith.addf %359, %360 : vector<4x64xf32>
    %362 = vector.extract_strided_slice %361 {offsets = [0, 0], sizes = [4, 32], strides = [1, 1]} : vector<4x64xf32> to vector<4x32xf32>
    %363 = arith.index_cast %c6_i32_127 : i32 to index
    %c0_136 = arith.constant 0 : index
    %c0_137 = arith.constant 0 : index
    %364 = vector.load %arg8[%363, %c0_136, %c0_137] : memref<8x4x64xf32, #tpu.memory_space<vmem>>, vector<1x4x32xf32>
    %365 = vector.shape_cast %364 : vector<1x4x32xf32> to vector<4x32xf32>
    %366 = vector.shape_cast %362 : vector<4x32xf32> to vector<1x4x32xf32>
    tpu.vector_store %arg8[%363, %c0_136, %c0_137], %366 {strides = array<i32>} : memref<8x4x64xf32, #tpu.memory_space<vmem>>, vector<1x4x32xf32>,
    %367 = vector.extract_strided_slice %361 {offsets = [0, 32], sizes = [4, 32], strides = [1, 1]} : vector<4x64xf32> to vector<4x32xf32>
    %368 = arith.index_cast %332 : i32 to index
    %c0_138 = arith.constant 0 : index
    %c32_139 = arith.constant 32 : index
    %369 = vector.load %arg8[%368, %c0_138, %c32_139] : memref<8x4x64xf32, #tpu.memory_space<vmem>>, vector<1x4x32xf32>
    %370 = vector.shape_cast %369 : vector<1x4x32xf32> to vector<4x32xf32>
    %371 = vector.shape_cast %367 : vector<4x32xf32> to vector<1x4x32xf32>
    tpu.vector_store %arg8[%368, %c0_138, %c32_139], %371 {strides = array<i32>} : memref<8x4x64xf32, #tpu.memory_space<vmem>>, vector<1x4x32xf32>,
    %c7_i32_140 = arith.constant 7 : i32
    %c7_i32_141 = arith.constant 7 : i32
    %372 = arith.subi %c7_i32_141, %c7_i32_140 : i32
    %373 = arith.index_cast %c7_i32_140 : i32 to index
    %c0_142 = arith.constant 0 : index
    %c0_143 = arith.constant 0 : index
    %374 = vector.load %arg10[%373, %c0_142, %c0_143] : memref<8x4x192xf32, #tpu.memory_space<vmem>>, vector<1x4x192xf32>
    %375 = vector.shape_cast %374 : vector<1x4x192xf32> to vector<4x192xf32>
    %376 = arith.index_cast %372 : i32 to index
    %c0_144 = arith.constant 0 : index
    %c0_145 = arith.constant 0 : index
    %377 = vector.load %arg10[%376, %c0_144, %c0_145] : memref<8x4x192xf32, #tpu.memory_space<vmem>>, vector<1x4x192xf32>
    %378 = vector.shape_cast %377 : vector<1x4x192xf32> to vector<4x192xf32>
    %379 = arith.select %90, %375, %378 : vector<4x192xi1>, vector<4x192xf32>
    %cst_146 = arith.constant dense<0.000000e+00> : vector<4x192xf32>
    %380 = tpu.matmul %361, %82, %cst_146 {dimension_numbers = #tpu.dot_dimension_numbers<[1], [0], [0], [1], [0, 0, 1, 1], [], []>} : vector<4x64xf32>, vector<64x192xf32>, vector<4x192xf32> -> vector<4x192xf32>
    %381 = vector.extract_strided_slice %379 {offsets = [0, 0], sizes = [4, 128], strides = [1, 1]} : vector<4x192xf32> to vector<4x128xf32>
    %382 = vector.extract_strided_slice %380 {offsets = [0, 0], sizes = [4, 128], strides = [1, 1]} : vector<4x192xf32> to vector<4x128xf32>
    %383 = arith.addf %381, %382 : vector<4x128xf32>
    %384 = arith.negf %383 : vector<4x128xf32>
    %385 = math.exp %384 : vector<4x128xf32>
    %cst_147 = arith.constant 1.000000e+00 : f32
    %386 = vector.broadcast %cst_147 : f32 to vector<4x128xf32>
    %387 = arith.addf %386, %385 : vector<4x128xf32>
    %388 = arith.divf %386, %387 : vector<4x128xf32>
    %389 = vector.extract_strided_slice %388 {offsets = [0, 0], sizes = [4, 64], strides = [1, 1]} : vector<4x128xf32> to vector<4x64xf32>
    %390 = vector.extract_strided_slice %388 {offsets = [0, 64], sizes = [4, 64], strides = [1, 1]} : vector<4x128xf32> to vector<4x64xf32>
    %391 = vector.extract_strided_slice %379 {offsets = [0, 128], sizes = [4, 64], strides = [1, 1]} : vector<4x192xf32> to vector<4x64xf32>
    %392 = vector.extract_strided_slice %380 {offsets = [0, 128], sizes = [4, 64], strides = [1, 1]} : vector<4x192xf32> to vector<4x64xf32>
    %393 = arith.addf %392, %85 : vector<4x64xf32>
    %394 = arith.mulf %389, %393 : vector<4x64xf32>
    %395 = arith.addf %391, %394 : vector<4x64xf32>
    %396 = math.tanh %395 : vector<4x64xf32>
    %cst_148 = arith.constant 1.000000e+00 : f32
    %397 = vector.broadcast %cst_148 : f32 to vector<4x64xf32>
    %398 = arith.subf %397, %390 : vector<4x64xf32>
    %399 = arith.mulf %398, %396 : vector<4x64xf32>
    %400 = arith.mulf %390, %361 : vector<4x64xf32>
    %401 = arith.addf %399, %400 : vector<4x64xf32>
    %402 = vector.extract_strided_slice %401 {offsets = [0, 0], sizes = [4, 32], strides = [1, 1]} : vector<4x64xf32> to vector<4x32xf32>
    %403 = arith.index_cast %c7_i32_140 : i32 to index
    %c0_149 = arith.constant 0 : index
    %c0_150 = arith.constant 0 : index
    %404 = vector.load %arg8[%403, %c0_149, %c0_150] : memref<8x4x64xf32, #tpu.memory_space<vmem>>, vector<1x4x32xf32>
    %405 = vector.shape_cast %404 : vector<1x4x32xf32> to vector<4x32xf32>
    %406 = vector.shape_cast %402 : vector<4x32xf32> to vector<1x4x32xf32>
    tpu.vector_store %arg8[%403, %c0_149, %c0_150], %406 {strides = array<i32>} : memref<8x4x64xf32, #tpu.memory_space<vmem>>, vector<1x4x32xf32>,
    %407 = vector.extract_strided_slice %401 {offsets = [0, 32], sizes = [4, 32], strides = [1, 1]} : vector<4x64xf32> to vector<4x32xf32>
    %408 = arith.index_cast %372 : i32 to index
    %c0_151 = arith.constant 0 : index
    %c32_152 = arith.constant 32 : index
    %409 = vector.load %arg8[%408, %c0_151, %c32_152] : memref<8x4x64xf32, #tpu.memory_space<vmem>>, vector<1x4x32xf32>
    %410 = vector.shape_cast %409 : vector<1x4x32xf32> to vector<4x32xf32>
    %411 = vector.shape_cast %407 : vector<4x32xf32> to vector<1x4x32xf32>
    tpu.vector_store %arg8[%408, %c0_151, %c32_152], %411 {strides = array<i32>} : memref<8x4x64xf32, #tpu.memory_space<vmem>>, vector<1x4x32xf32>,
    %c8_i32_153 = arith.constant 8 : i32
    %c0_154 = arith.constant 0 : index
    %c0_155 = arith.constant 0 : index
    %412 = vector.load %arg6[%c0_154, %c0_155] : memref<64x32xf32, #tpu.memory_space<vmem>>, vector<64x32xf32>
    %cst_156 = arith.constant dense<0.000000e+00> : vector<4x32xf32>
    %413 = tpu.matmul %401, %412, %cst_156 {dimension_numbers = #tpu.dot_dimension_numbers<[1], [0], [0], [1], [0, 0, 1, 1], [], []>} : vector<4x64xf32>, vector<64x32xf32>, vector<4x32xf32> -> vector<4x32xf32>
    %c0_157 = arith.constant 0 : index
    %c0_158 = arith.constant 0 : index
    %414 = vector.load %arg7[%c0_157, %c0_158] : memref<1x32xf32, #tpu.memory_space<vmem>>, vector<1x32xf32>
    %415 = vector.broadcast %414 : vector<1x32xf32> to vector<4x32xf32>
    %416 = arith.addf %413, %415 : vector<4x32xf32>
    %417 = math.tanh %416 : vector<4x32xf32>
    %c0_159 = arith.constant 0 : index
    %c0_160 = arith.constant 0 : index
    %418 = vector.load %arg9[%c0_159, %c0_160] : memref<4x32xf32, #tpu.memory_space<vmem>>, vector<4x32xf32>
    tpu.vector_store %arg9[%c0_159, %c0_160], %417 {strides = array<i32>} : memref<4x32xf32, #tpu.memory_space<vmem>>, vector<4x32xf32>,
    return
  }
}

</mosaic_0001>

<llo_original>
// kernel: encoder_forward.1
$region0: #{encoder_forward.1}
  #allocation0 [shape = 'u32[]', space=smem, size = 0x4, offset = 0x4, fixed_abs, tag = 'smem constant byte address 0x4 - core index']
  #allocation1 [shape = 'u32[144,128]{1,0:T(1,128)}', space=vmem, size = 0x12000, scoped, tag = 'internal scratch']
  #allocation2 [shape = 'f32[8,4,192]{2,1,0:T(4,128)}', space=vmem, size = 0x8000, scoped, tag = 'scratch operand']
  %s0 = inlined_call_operand.vmem [shape: f32[8,4,16], index: 0, kind: input, shape index: {}]
  %s1 = inlined_call_operand.vmem [shape: f32[16,192], index: 1, kind: input, shape index: {}]
  %s2 = inlined_call_operand.vmem [shape: f32[64,192], index: 2, kind: input, shape index: {}]
  %s3 = inlined_call_operand.vmem [shape: f32[1,192], index: 3, kind: input, shape index: {}]
  %s4 = inlined_call_operand.vmem [shape: f32[1,64], index: 4, kind: input, shape index: {}]
  %s5 = inlined_call_operand.vmem [shape: f32[1,192], index: 5, kind: input, shape index: {}]
  %s6 = inlined_call_operand.vmem [shape: f32[64,32], index: 6, kind: input, shape index: {}]
  %s7 = inlined_call_operand.vmem [shape: f32[1,32], index: 7, kind: input, shape index: {}]
  %s8 = inlined_call_operand.hbm [shape: f32[8,4,64], index: 8, kind: output, shape index: {0}]
  %s9 = inlined_call_operand.hbm [shape: f32[4,32], index: 9, kind: output, shape index: {1}]
  %10 = xla_tuple %s8, %s9
  %s11 = sld [smem:[#allocation0]]
  $region50: #{encoder_forward.1} parent=0
    _
  %s13 = ssub.s32 1, %s11
  %s14 = scalar_select 0, %s13, %s11
  $region1: #{encoder_forward.1} parent=0
    #allocation3 [shape = 'u8[16384]{0}', space=vmem, size = 0x4000, scoped, tag = 'output window, operand 0, single buffered']
    #allocation4 [shape = 's32[1]{0}', space=sflag, size = 0x4, scoped, tag = 'scoped memory for encoder_forward.1']
    #allocation5 [shape = 'u8[2048]{0}', space=vmem, size = 0x800, scoped, tag = 'output window, operand 1, single buffered']
    #allocation6 [shape = 's32[1]{0}', space=sflag, size = 0x4, scoped, tag = 'scoped memory for encoder_forward.1']
    %15 = vsyncpa [#allocation4], 0
    %16 = vsyncpa [#allocation6], 0
    // Predicated region
    $region2: #{encoder_forward.1} parent=1 // pred_check
      _
    $region3: #{encoder_forward.1} parent=1 // pred_check_branch
      %18 = sbr.rel (0) target = $region5
    $region4: #{encoder_forward.1} parent=1 // pred_region
      _
    $region5: #{encoder_forward.1} parent=1 // pred_fallthru
      _
    // Predicated region
    $region6: #{encoder_forward.1} parent=1 // pred_check
      _
    $region7: #{encoder_forward.1} parent=1 // pred_check_branch
      %20 = sbr.rel (0) target = $region9
    $region8: #{encoder_forward.1} parent=1 // pred_region
      _
    $region9: #{encoder_forward.1} parent=1 // pred_fallthru
      _
    // Predicated region
    $region10: #{encoder_forward.1} parent=1 // pred_check
      _
    $region11: #{encoder_forward.1} parent=1 // pred_check_branch
      %22 = sbr.rel (0) target = $region13
    $region12: #{encoder_forward.1} parent=1 // pred_region
      _
    $region13: #{encoder_forward.1} parent=1 // pred_fallthru
      _
    // Predicated region
    $region14: #{encoder_forward.1} parent=1 // pred_check
      _
    $region15: #{encoder_forward.1} parent=1 // pred_check_branch
      %24 = sbr.rel (0) target = $region17
    $region16: #{encoder_forward.1} parent=1 // pred_region
      _
    $region17: #{encoder_forward.1} parent=1 // pred_fallthru
      _
    // Predicated region
    $region18: #{encoder_forward.1} parent=1 // pred_check
      _
    $region19: #{encoder_forward.1} parent=1 // pred_check_branch
      %26 = sbr.rel (0) target = $region21
    $region20: #{encoder_forward.1} parent=1 // pred_region
      _
    $region21: #{encoder_forward.1} parent=1 // pred_fallthru
      _
    // Predicated region
    $region22: #{encoder_forward.1} parent=1 // pred_check
      _
    $region23: #{encoder_forward.1} parent=1 // pred_check_branch
      %28 = sbr.rel (0) target = $region25
    $region24: #{encoder_forward.1} parent=1 // pred_region
      _
    $region25: #{encoder_forward.1} parent=1 // pred_fallthru
      _
    // Predicated region
    $region26: #{encoder_forward.1} parent=1 // pred_check
      _
    $region27: #{encoder_forward.1} parent=1 // pred_check_branch
      %30 = sbr.rel (0) target = $region29
    $region28: #{encoder_forward.1} parent=1 // pred_region
      _
    $region29: #{encoder_forward.1} parent=1 // pred_fallthru
      _
    // Predicated region
    $region30: #{encoder_forward.1} parent=1 // pred_check
      _
    $region31: #{encoder_forward.1} parent=1 // pred_check_branch
      %32 = sbr.rel (0) target = $region33
    $region32: #{encoder_forward.1} parent=1 // pred_region
      _
    $region33: #{encoder_forward.1} parent=1 // pred_fallthru
      _
    %v33 = vld [vmem:[%s1] sm:$0xff]
    %v34 = vld [vmem:[%s1 + $0x8] sm:$0xff]
    %v35 = vld [vmem:[%s1 + $0x10] sm:$0xff]
    %v36 = vld [vmem:[%s1 + $0x18] sm:$0xff]
    %v37 = vld [vmem:[%s3] sm:$0x3]
    %v38 = vld [vmem:[%s0] sm:$0xf]
    %v40 = vlaneseq
    %v41 = vshrl.u32 %v40, 7
    %v42 = vsub.s32 0, %v41
    %v43 = vrot.slane %v37, %v42
    %v44 = vlaneseq
    %v45 = vshrl.u32 %v44, 7
    %v46 = vsub.s32 1, %v45
    %v47 = vrot.slane %v37, %v46
    %vm50 = vcmask 130048
    %v52 = vsel %vm50, %v38, 0
    %54 = vmatprep.subr.mxu0 %v34
    %55 = vmatpush1.msra.mxu0 %v33
    %56 = vmatprep.subr.mxu0 %v36
    %57 = vmatpush1.msra.mxu0 %v35
    %58 = vmatprep.subr.mxu0 0.0
    %59 = vmatpush1.msra.mxu0 0.0
    %60 = vmatprep.subr.mxu0 0.0
    %61 = vmatpush1.msra.mxu0 0.0
    %62 = vmatprep.subr.mxu0 0.0
    %63 = vmatpush1.msra.mxu0 0.0
    %64 = vmatprep.subr.mxu0 0.0
    %65 = vmatpush1.msra.mxu0 0.0
    %66 = vmatprep.subr.mxu0 0.0
    %67 = vmatpush1.msra.mxu0 0.0
    %68 = vmatprep.subr.mxu0 0.0
    %69 = vmatpush1.msra.mxu0 0.0
    %70 = vmatprep.subr.mxu0 0.0
    %71 = vmatpush1.msra.mxu0 0.0
    %72 = vmatprep.subr.mxu0 0.0
    %73 = vmatpush1.msra.mxu0 0.0
    %74 = vmatprep.subr.mxu0 0.0
    %75 = vmatpush1.msra.mxu0 0.0
    %76 = vmatprep.subr.mxu0 0.0
    %77 = vmatpush1.msra.mxu0 0.0
    %78 = vmatprep.subr.mxu0 0.0
    %79 = vmatpush1.msra.mxu0 0.0
    %80 = vmatprep.subr.mxu0 0.0
    %81 = vmatpush1.msra.mxu0 0.0
    %82 = vmatprep.subr.mxu0 0.0
    %83 = vmatpush1.msra.mxu0 0.0
    %84 = vmatprep.subr.mxu0 0.0
    %85 = vmatpush1.msra.mxu0 0.0
    %86 = vmatprep.subr.mxu0 0.0
    %87 = vmatpush1.msra.mxu0 0.0
    %88 = vmatprep.subr.mxu0 0.0
    %89 = vmatpush1.msra.mxu0 0.0
    %90 = vmatprep.subr.mxu0 0.0
    %91 = vmatpush1.msra.mxu0 0.0
    %92 = vmatprep.subr.mxu0 0.0
    %93 = vmatpush1.msra.mxu0 0.0
    %94 = vmatprep.subr.mxu0 0.0
    %95 = vmatpush1.msra.mxu0 0.0
    %96 = vmatprep.subr.mxu0 0.0
    %97 = vmatpush1.msra.mxu0 0.0
    %98 = vmatprep.subr.mxu0 0.0
    %99 = vmatpush1.msra.mxu0 0.0
    %100 = vmatprep.subr.mxu0 0.0
    %101 = vmatpush1.msra.mxu0 0.0
    %102 = vmatprep.subr.mxu0 0.0
    %103 = vmatpush1.msra.mxu0 0.0
    %104 = vmatprep.subr.mxu0 0.0
    %105 = vmatpush1.msra.mxu0 0.0
    %106 = vmatprep.subr.mxu0 0.0
    %107 = vmatpush1.msra.mxu0 0.0
    %108 = vmatprep.subr.mxu0 0.0
    %109 = vmatpush1.msra.mxu0 0.0
    %110 = vmatprep.subr.mxu0 0.0
    %111 = vmatpush1.msra.mxu0 0.0
    %112 = vmatprep.subr.mxu0 0.0
    %113 = vmatpush1.msra.mxu0 0.0
    %114 = vmatprep.subr.mxu0 0.0
    %115 = vmatpush1.msra.mxu0 0.0
    %116 = vmatprep.subr.mxu0 0.0
    %117 = vmatpush1.msra.mxu0 0.0
    %118 = vmatprep.mubr.f32.mxu0 0.0
    %119 = vmatmul.mubr.f32.gmra.mrb[0].mxu0 %v52
    %v120 = vpop.f32.mrb[0].mxu0
    %v121 = vadd.f32 %v43, %v120
    %v122 = vpop.f32.mrb[0].mxu0
    %v123 = vadd.f32 %v47, %v122
    %124 = vdwg.mxu0
    %v127 = vcombine.low %v121, %v123
    %vm129 = vcmask 1043456
    %vm130 = vcmask 523268
    %vm131 = vmor %vm130, %vm129
    %132 = vst.msk [vmem:[#allocation2] sm:$0xff] %vm131, %v127
    %s133 = scalar_lea.vmem %s0, 4
    %v134 = vld [vmem:[%s133] sm:$0xf]
    %v136 = vsel %vm50, %v134, 0
    %138 = vmatprep.subr.mxu0 %v34
    %139 = vmatpush1.msra.mxu0 %v33
    %140 = vmatprep.subr.mxu0 %v36
    %141 = vmatpush1.msra.mxu0 %v35
    %142 = vmatprep.subr.mxu0 0.0
    %143 = vmatpush1.msra.mxu0 0.0
    %144 = vmatprep.subr.mxu0 0.0
    %145 = vmatpush1.msra.mxu0 0.0
    %146 = vmatprep.subr.mxu0 0.0
    %147 = vmatpush1.msra.mxu0 0.0
    %148 = vmatprep.subr.mxu0 0.0
    %149 = vmatpush1.msra.mxu0 0.0
    %150 = vmatprep.subr.mxu0 0.0
    %151 = vmatpush1.msra.mxu0 0.0
    %152 = vmatprep.subr.mxu0 0.0
    %153 = vmatpush1.msra.mxu0 0.0
    %154 = vmatprep.subr.mxu0 0.0
    %155 = vmatpush1.msra.mxu0 0.0
    %156 = vmatprep.subr.mxu0 0.0
    %157 = vmatpush1.msra.mxu0 0.0
    %158 = vmatprep.subr.mxu0 0.0
    %159 = vmatpush1.msra.mxu0 0.0
    %160 = vmatprep.subr.mxu0 0.0
    %161 = vmatpush1.msra.mxu0 0.0
    %162 = vmatprep.subr.mxu0 0.0
    %163 = vmatpush1.msra.mxu0 0.0
    %164 = vmatprep.subr.mxu0 0.0
    %165 = vmatpush1.msra.mxu0 0.0
    %166 = vmatprep.subr.mxu0 0.0
    %167 = vmatpush1.msra.mxu0 0.0
    %168 = vmatprep.subr.mxu0 0.0
    %169 = vmatpush1.msra.mxu0 0.0
    %170 = vmatprep.subr.mxu0 0.0
    %171 = vmatpush1.msra.mxu0 0.0
    %172 = vmatprep.subr.mxu0 0.0
    %173 = vmatpush1.msra.mxu0 0.0
    %174 = vmatprep.subr.mxu0 0.0
    %175 = vmatpush1.msra.mxu0 0.0
    %176 = vmatprep.subr.mxu0 0.0
    %177 = vmatpush1.msra.mxu0 0.0
    %178 = vmatprep.subr.mxu0 0.0
    %179 = vmatpush1.msra.mxu0 0.0
    %180 = vmatprep.subr.mxu0 0.0
    %181 = vmatpush1.msra.mxu0 0.0
    %182 = vmatprep.subr.mxu0 0.0
    %183 = vmatpush1.msra.mxu0 0.0
    %184 = vmatprep.subr.mxu0 0.0
    %185 = vmatpush1.msra.mxu0 0.0
    %186 = vmatprep.subr.mxu0 0.0
    %187 = vmatpush1.msra.mxu0 0.0
    %188 = vmatprep.subr.mxu0 0.0
    %189 = vmatpush1.msra.mxu0 0.0
    %190 = vmatprep.subr.mxu0 0.0
    %191 = vmatpush1.msra.mxu0 0.0
    %192 = vmatprep.subr.mxu0 0.0
    %193 = vmatpush1.msra.mxu0 0.0
    %194 = vmatprep.subr.mxu0 0.0
    %195 = vmatpush1.msra.mxu0 0.0
    %196 = vmatprep.subr.mxu0 0.0
    %197 = vmatpush1.msra.mxu0 0.0
    %198 = vmatprep.subr.mxu0 0.0
    %199 = vmatpush1.msra.mxu0 0.0
    %200 = vmatprep.subr.mxu0 0.0
    %201 = vmatpush1.msra.mxu0 0.0
    %202 = vmatprep.mubr.f32.mxu0 0.0
    %203 = vmatmul.mubr.f32.gmra.mrb[0].mxu0 %v136
    %v204 = vpop.f32.mrb[0].mxu0
    %v205 = vadd.f32 %v43, %v204
    %v206 = vpop.f32.mrb[0].mxu0
    %v207 = vadd.f32 %v47, %v206
    %208 = vdwg.mxu0
    %v211 = vcombine.low %v205, %v207
    %s213 = scalar_lea.vmem [#allocation2], 8
    %214 = vst.msk [vmem:[%s213] sm:$0xff] %vm131, %v211
    %s215 = scalar_lea.vmem %s0, 8
    %v216 = vld [vmem:[%s215] sm:$0xf]
    %v218 = vsel %vm50, %v216, 0
    %220 = vmatprep.subr.mxu0 %v34
    %221 = vmatpush1.msra.mxu0 %v33
    %222 = vmatprep.subr.mxu0 %v36
    %223 = vmatpush1.msra.mxu0 %v35
    %224 = vmatprep.subr.mxu0 0.0
    %225 = vmatpush1.msra.mxu0 0.0
    %226 = vmatprep.subr.mxu0 0.0
    %227 = vmatpush1.msra.mxu0 0.0
    %228 = vmatprep.subr.mxu0 0.0
    %229 = vmatpush1.msra.mxu0 0.0
    %230 = vmatprep.subr.mxu0 0.0
    %231 = vmatpush1.msra.mxu0 0.0
    %232 = vmatprep.subr.mxu0 0.0
    %233 = vmatpush1.msra.mxu0 0.0
    %234 = vmatprep.subr.mxu0 0.0
    %235 = vmatpush1.msra.mxu0 0.0
    %236 = vmatprep.subr.mxu0 0.0
    %237 = vmatpush1.msra.mxu0 0.0
    %238 = vmatprep.subr.mxu0 0.0
    %239 = vmatpush1.msra.mxu0 0.0
    %240 = vmatprep.subr.mxu0 0.0
    %241 = vmatpush1.msra.mxu0 0.0
    %242 = vmatprep.subr.mxu0 0.0
    %243 = vmatpush1.msra.mxu0 0.0
    %244 = vmatprep.subr.mxu0 0.0
    %245 = vmatpush1.msra.mxu0 0.0
    %246 = vmatprep.subr.mxu0 0.0
    %247 = vmatpush1.msra.mxu0 0.0
    %248 = vmatprep.subr.mxu0 0.0
    %249 = vmatpush1.msra.mxu0 0.0
    %250 = vmatprep.subr.mxu0 0.0
    %251 = vmatpush1.msra.mxu0 0.0
    %252 = vmatprep.subr.mxu0 0.0
    %253 = vmatpush1.msra.mxu0 0.0
    %254 = vmatprep.subr.mxu0 0.0
    %255 = vmatpush1.msra.mxu0 0.0
    %256 = vmatprep.subr.mxu0 0.0
    %257 = vmatpush1.msra.mxu0 0.0
    %258 = vmatprep.subr.mxu0 0.0
    %259 = vmatpush1.msra.mxu0 0.0
    %260 = vmatprep.subr.mxu0 0.0
    %261 = vmatpush1.msra.mxu0 0.0
    %262 = vmatprep.subr.mxu0 0.0
    %263 = vmatpush1.msra.mxu0 0.0
    %264 = vmatprep.subr.mxu0 0.0
    %265 = vmatpush1.msra.mxu0 0.0
    %266 = vmatprep.subr.mxu0 0.0
    %267 = vmatpush1.msra.mxu0 0.0
    %268 = vmatprep.subr.mxu0 0.0
    %269 = vmatpush1.msra.mxu0 0.0
    %270 = vmatprep.subr.mxu0 0.0
    %271 = vmatpush1.msra.mxu0 0.0
    %272 = vmatprep.subr.mxu0 0.0
    %273 = vmatpush1.msra.mxu0 0.0
    %274 = vmatprep.subr.mxu0 0.0
    %275 = vmatpush1.msra.mxu0 0.0
    %276 = vmatprep.subr.mxu0 0.0
    %277 = vmatpush1.msra.mxu0 0.0
    %278 = vmatprep.subr.mxu0 0.0
    %279 = vmatpush1.msra.mxu0 0.0
    %280 = vmatprep.subr.mxu0 0.0
    %281 = vmatpush1.msra.mxu0 0.0
    %282 = vmatprep.subr.mxu0 0.0
    %283 = vmatpush1.msra.mxu0 0.0
    %284 = vmatprep.mubr.f32.mxu0 0.0
    %285 = vmatmul.mubr.f32.gmra.mrb[0].mxu0 %v218
    %v286 = vpop.f32.mrb[0].mxu0
    %v287 = vadd.f32 %v43, %v286
    %v288 = vpop.f32.mrb[0].mxu0
    %v289 = vadd.f32 %v47, %v288
    %290 = vdwg.mxu0
    %v293 = vcombine.low %v287, %v289
    %s295 = scalar_lea.vmem [#allocation2], 16
    %296 = vst.msk [vmem:[%s295] sm:$0xff] %vm131, %v293
    %s297 = scalar_lea.vmem %s0, 12
    %v298 = vld [vmem:[%s297] sm:$0xf]
    %v300 = vsel %vm50, %v298, 0
    %302 = vmatprep.subr.mxu0 %v34
    %303 = vmatpush1.msra.mxu0 %v33
    %304 = vmatprep.subr.mxu0 %v36
    %305 = vmatpush1.msra.mxu0 %v35
    %306 = vmatprep.subr.mxu0 0.0
    %307 = vmatpush1.msra.mxu0 0.0
    %308 = vmatprep.subr.mxu0 0.0
    %309 = vmatpush1.msra.mxu0 0.0
    %310 = vmatprep.subr.mxu0 0.0
    %311 = vmatpush1.msra.mxu0 0.0
    %312 = vmatprep.subr.mxu0 0.0
    %313 = vmatpush1.msra.mxu0 0.0
    %314 = vmatprep.subr.mxu0 0.0
    %315 = vmatpush1.msra.mxu0 0.0
    %316 = vmatprep.subr.mxu0 0.0
    %317 = vmatpush1.msra.mxu0 0.0
    %318 = vmatprep.subr.mxu0 0.0
    %319 = vmatpush1.msra.mxu0 0.0
    %320 = vmatprep.subr.mxu0 0.0
    %321 = vmatpush1.msra.mxu0 0.0
    %322 = vmatprep.subr.mxu0 0.0
    %323 = vmatpush1.msra.mxu0 0.0
    %324 = vmatprep.subr.mxu0 0.0
    %325 = vmatpush1.msra.mxu0 0.0
    %326 = vmatprep.subr.mxu0 0.0
    %327 = vmatpush1.msra.mxu0 0.0
    %328 = vmatprep.subr.mxu0 0.0
    %329 = vmatpush1.msra.mxu0 0.0
    %330 = vmatprep.subr.mxu0 0.0
    %331 = vmatpush1.msra.mxu0 0.0
    %332 = vmatprep.subr.mxu0 0.0
    %333 = vmatpush1.msra.mxu0 0.0
    %334 = vmatprep.subr.mxu0 0.0
    %335 = vmatpush1.msra.mxu0 0.0
    %336 = vmatprep.subr.mxu0 0.0
    %337 = vmatpush1.msra.mxu0 0.0
    %338 = vmatprep.subr.mxu0 0.0
    %339 = vmatpush1.msra.mxu0 0.0
    %340 = vmatprep.subr.mxu0 0.0
    %341 = vmatpush1.msra.mxu0 0.0
    %342 = vmatprep.subr.mxu0 0.0
    %343 = vmatpush1.msra.mxu0 0.0
    %344 = vmatprep.subr.mxu0 0.0
    %345 = vmatpush1.msra.mxu0 0.0
    %346 = vmatprep.subr.mxu0 0.0
    %347 = vmatpush1.msra.mxu0 0.0
    %348 = vmatprep.subr.mxu0 0.0
    %349 = vmatpush1.msra.mxu0 0.0
    %350 = vmatprep.subr.mxu0 0.0
    %351 = vmatpush1.msra.mxu0 0.0
    %352 = vmatprep.subr.mxu0 0.0
    %353 = vmatpush1.msra.mxu0 0.0
    %354 = vmatprep.subr.mxu0 0.0
    %355 = vmatpush1.msra.mxu0 0.0
    %356 = vmatprep.subr.mxu0 0.0
    %357 = vmatpush1.msra.mxu0 0.0
    %358 = vmatprep.subr.mxu0 0.0
    %359 = vmatpush1.msra.mxu0 0.0
    %360 = vmatprep.subr.mxu0 0.0
    %361 = vmatpush1.msra.mxu0 0.0
    %362 = vmatprep.subr.mxu0 0.0
    %363 = vmatpush1.msra.mxu0 0.0
    %364 = vmatprep.subr.mxu0 0.0
    %365 = vmatpush1.msra.mxu0 0.0
    %366 = vmatprep.mubr.f32.mxu0 0.0
    %367 = vmatmul.mubr.f32.gmra.mrb[0].mxu0 %v300
    %v368 = vpop.f32.mrb[0].mxu0
    %v369 = vadd.f32 %v43, %v368
    %v370 = vpop.f32.mrb[0].mxu0
    %v371 = vadd.f32 %v47, %v370
    %372 = vdwg.mxu0
    %v375 = vcombine.low %v369, %v371
    %s377 = scalar_lea.vmem [#allocation2], 24
    %378 = vst.msk [vmem:[%s377] sm:$0xff] %vm131, %v375
    %s379 = scalar_lea.vmem %s0, 16
    %v380 = vld [vmem:[%s379] sm:$0xf]
    %v382 = vsel %vm50, %v380, 0
    %384 = vmatprep.subr.mxu0 %v34
    %385 = vmatpush1.msra.mxu0 %v33
    %386 = vmatprep.subr.mxu0 %v36
    %387 = vmatpush1.msra.mxu0 %v35
    %388 = vmatprep.subr.mxu0 0.0
    %389 = vmatpush1.msra.mxu0 0.0
    %390 = vmatprep.subr.mxu0 0.0
    %391 = vmatpush1.msra.mxu0 0.0
    %392 = vmatprep.subr.mxu0 0.0
    %393 = vmatpush1.msra.mxu0 0.0
    %394 = vmatprep.subr.mxu0 0.0
    %395 = vmatpush1.msra.mxu0 0.0
    %396 = vmatprep.subr.mxu0 0.0
    %397 = vmatpush1.msra.mxu0 0.0
    %398 = vmatprep.subr.mxu0 0.0
    %399 = vmatpush1.msra.mxu0 0.0
    %400 = vmatprep.subr.mxu0 0.0
    %401 = vmatpush1.msra.mxu0 0.0
    %402 = vmatprep.subr.mxu0 0.0
    %403 = vmatpush1.msra.mxu0 0.0
    %404 = vmatprep.subr.mxu0 0.0
    %405 = vmatpush1.msra.mxu0 0.0
    %406 = vmatprep.subr.mxu0 0.0
    %407 = vmatpush1.msra.mxu0 0.0
    %408 = vmatprep.subr.mxu0 0.0
    %409 = vmatpush1.msra.mxu0 0.0
    %410 = vmatprep.subr.mxu0 0.0
    %411 = vmatpush1.msra.mxu0 0.0
    %412 = vmatprep.subr.mxu0 0.0
    %413 = vmatpush1.msra.mxu0 0.0
    %414 = vmatprep.subr.mxu0 0.0
    %415 = vmatpush1.msra.mxu0 0.0
    %416 = vmatprep.subr.mxu0 0.0
    %417 = vmatpush1.msra.mxu0 0.0
    %418 = vmatprep.subr.mxu0 0.0
    %419 = vmatpush1.msra.mxu0 0.0
    %420 = vmatprep.subr.mxu0 0.0
    %421 = vmatpush1.msra.mxu0 0.0
    %422 = vmatprep.subr.mxu0 0.0
    %423 = vmatpush1.msra.mxu0 0.0
    %424 = vmatprep.subr.mxu0 0.0
    %425 = vmatpush1.msra.mxu0 0.0
    %426 = vmatprep.subr.mxu0 0.0
    %427 = vmatpush1.msra.mxu0 0.0
    %428 = vmatprep.subr.mxu0 0.0
    %429 = vmatpush1.msra.mxu0 0.0
    %430 = vmatprep.subr.mxu0 0.0
    %431 = vmatpush1.msra.mxu0 0.0
    %432 = vmatprep.subr.mxu0 0.0
    %433 = vmatpush1.msra.mxu0 0.0
    %434 = vmatprep.subr.mxu0 0.0
    %435 = vmatpush1.msra.mxu0 0.0
    %436 = vmatprep.subr.mxu0 0.0
    %437 = vmatpush1.msra.mxu0 0.0
    %438 = vmatprep.subr.mxu0 0.0
    %439 = vmatpush1.msra.mxu0 0.0
    %440 = vmatprep.subr.mxu0 0.0
    %441 = vmatpush1.msra.mxu0 0.0
    %442 = vmatprep.subr.mxu0 0.0
    %443 = vmatpush1.msra.mxu0 0.0
    %444 = vmatprep.subr.mxu0 0.0
    %445 = vmatpush1.msra.mxu0 0.0
    %446 = vmatprep.subr.mxu0 0.0
    %447 = vmatpush1.msra.mxu0 0.0
    %448 = vmatprep.mubr.f32.mxu0 0.0
    %449 = vmatmul.mubr.f32.gmra.mrb[0].mxu0 %v382
    %v450 = vpop.f32.mrb[0].mxu0
    %v451 = vadd.f32 %v43, %v450
    %v452 = vpop.f32.mrb[0].mxu0
    %v453 = vadd.f32 %v47, %v452
    %454 = vdwg.mxu0
    %v457 = vcombine.low %v451, %v453
    %s459 = scalar_lea.vmem [#allocation2], 32
    %460 = vst.msk [vmem:[%s459] sm:$0xff] %vm131, %v457
    %s461 = scalar_lea.vmem %s0, 20
    %v462 = vld [vmem:[%s461] sm:$0xf]
    %v464 = vsel %vm50, %v462, 0
    %466 = vmatprep.subr.mxu0 %v34
    %467 = vmatpush1.msra.mxu0 %v33
    %468 = vmatprep.subr.mxu0 %v36
    %469 = vmatpush1.msra.mxu0 %v35
    %470 = vmatprep.subr.mxu0 0.0
    %471 = vmatpush1.msra.mxu0 0.0
    %472 = vmatprep.subr.mxu0 0.0
    %473 = vmatpush1.msra.mxu0 0.0
    %474 = vmatprep.subr.mxu0 0.0
    %475 = vmatpush1.msra.mxu0 0.0
    %476 = vmatprep.subr.mxu0 0.0
    %477 = vmatpush1.msra.mxu0 0.0
    %478 = vmatprep.subr.mxu0 0.0
    %479 = vmatpush1.msra.mxu0 0.0
    %480 = vmatprep.subr.mxu0 0.0
    %481 = vmatpush1.msra.mxu0 0.0
    %482 = vmatprep.subr.mxu0 0.0
    %483 = vmatpush1.msra.mxu0 0.0
    %484 = vmatprep.subr.mxu0 0.0
    %485 = vmatpush1.msra.mxu0 0.0
    %486 = vmatprep.subr.mxu0 0.0
    %487 = vmatpush1.msra.mxu0 0.0
    %488 = vmatprep.subr.mxu0 0.0
    %489 = vmatpush1.msra.mxu0 0.0
    %490 = vmatprep.subr.mxu0 0.0
    %491 = vmatpush1.msra.mxu0 0.0
    %492 = vmatprep.subr.mxu0 0.0
    %493 = vmatpush1.msra.mxu0 0.0
    %494 = vmatprep.subr.mxu0 0.0
    %495 = vmatpush1.msra.mxu0 0.0
    %496 = vmatprep.subr.mxu0 0.0
    %497 = vmatpush1.msra.mxu0 0.0
    %498 = vmatprep.subr.mxu0 0.0
    %499 = vmatpush1.msra.mxu0 0.0
    %500 = vmatprep.subr.mxu0 0.0
    %501 = vmatpush1.msra.mxu0 0.0
    %502 = vmatprep.subr.mxu0 0.0
    %503 = vmatpush1.msra.mxu0 0.0
    %504 = vmatprep.subr.mxu0 0.0
    %505 = vmatpush1.msra.mxu0 0.0
    %506 = vmatprep.subr.mxu0 0.0
    %507 = vmatpush1.msra.mxu0 0.0
    %508 = vmatprep.subr.mxu0 0.0
    %509 = vmatpush1.msra.mxu0 0.0
    %510 = vmatprep.subr.mxu0 0.0
    %511 = vmatpush1.msra.mxu0 0.0
    %512 = vmatprep.subr.mxu0 0.0
    %513 = vmatpush1.msra.mxu0 0.0
    %514 = vmatprep.subr.mxu0 0.0
    %515 = vmatpush1.msra.mxu0 0.0
    %516 = vmatprep.subr.mxu0 0.0
    %517 = vmatpush1.msra.mxu0 0.0
    %518 = vmatprep.subr.mxu0 0.0
    %519 = vmatpush1.msra.mxu0 0.0
    %520 = vmatprep.subr.mxu0 0.0
    %521 = vmatpush1.msra.mxu0 0.0
    %522 = vmatprep.subr.mxu0 0.0
    %523 = vmatpush1.msra.mxu0 0.0
    %524 = vmatprep.subr.mxu0 0.0
    %525 = vmatpush1.msra.mxu0 0.0
    %526 = vmatprep.subr.mxu0 0.0
    %527 = vmatpush1.msra.mxu0 0.0
    %528 = vmatprep.subr.mxu0 0.0
    %529 = vmatpush1.msra.mxu0 0.0
    %530 = vmatprep.mubr.f32.mxu0 0.0
    %531 = vmatmul.mubr.f32.gmra.mrb[0].mxu0 %v464
    %v532 = vpop.f32.mrb[0].mxu0
    %v533 = vadd.f32 %v43, %v532
    %v534 = vpop.f32.mrb[0].mxu0
    %v535 = vadd.f32 %v47, %v534
    %536 = vdwg.mxu0
    %v539 = vcombine.low %v533, %v535
    %s541 = scalar_lea.vmem [#allocation2], 40
    %542 = vst.msk [vmem:[%s541] sm:$0xff] %vm131, %v539
    %s543 = scalar_lea.vmem %s0, 24
    %v544 = vld [vmem:[%s543] sm:$0xf]
    %v546 = vsel %vm50, %v544, 0
    %548 = vmatprep.subr.mxu0 %v34
    %549 = vmatpush1.msra.mxu0 %v33
    %550 = vmatprep.subr.mxu0 %v36
    %551 = vmatpush1.msra.mxu0 %v35
    %552 = vmatprep.subr.mxu0 0.0
    %553 = vmatpush1.msra.mxu0 0.0
    %554 = vmatprep.subr.mxu0 0.0
    %555 = vmatpush1.msra.mxu0 0.0
    %556 = vmatprep.subr.mxu0 0.0
    %557 = vmatpush1.msra.mxu0 0.0
    %558 = vmatprep.subr.mxu0 0.0
    %559 = vmatpush1.msra.mxu0 0.0
    %560 = vmatprep.subr.mxu0 0.0
    %561 = vmatpush1.msra.mxu0 0.0
    %562 = vmatprep.subr.mxu0 0.0
    %563 = vmatpush1.msra.mxu0 0.0
    %564 = vmatprep.subr.mxu0 0.0
    %565 = vmatpush1.msra.mxu0 0.0
    %566 = vmatprep.subr.mxu0 0.0
    %567 = vmatpush1.msra.mxu0 0.0
    %568 = vmatprep.subr.mxu0 0.0
    %569 = vmatpush1.msra.mxu0 0.0
    %570 = vmatprep.subr.mxu0 0.0
    %571 = vmatpush1.msra.mxu0 0.0
    %572 = vmatprep.subr.mxu0 0.0
    %573 = vmatpush1.msra.mxu0 0.0
    %574 = vmatprep.subr.mxu0 0.0
    %575 = vmatpush1.msra.mxu0 0.0
    %576 = vmatprep.subr.mxu0 0.0
    %577 = vmatpush1.msra.mxu0 0.0
    %578 = vmatprep.subr.mxu0 0.0
    %579 = vmatpush1.msra.mxu0 0.0
    %580 = vmatprep.subr.mxu0 0.0
    %581 = vmatpush1.msra.mxu0 0.0
    %582 = vmatprep.subr.mxu0 0.0
    %583 = vmatpush1.msra.mxu0 0.0
    %584 = vmatprep.subr.mxu0 0.0
    %585 = vmatpush1.msra.mxu0 0.0
    %586 = vmatprep.subr.mxu0 0.0
    %587 = vmatpush1.msra.mxu0 0.0
    %588 = vmatprep.subr.mxu0 0.0
    %589 = vmatpush1.msra.mxu0 0.0
    %590 = vmatprep.subr.mxu0 0.0
    %591 = vmatpush1.msra.mxu0 0.0
    %592 = vmatprep.subr.mxu0 0.0
    %593 = vmatpush1.msra.mxu0 0.0
    %594 = vmatprep.subr.mxu0 0.0
    %595 = vmatpush1.msra.mxu0 0.0
    %596 = vmatprep.subr.mxu0 0.0
    %597 = vmatpush1.msra.mxu0 0.0
    %598 = vmatprep.subr.mxu0 0.0
    %599 = vmatpush1.msra.mxu0 0.0
    %600 = vmatprep.subr.mxu0 0.0
    %601 = vmatpush1.msra.mxu0 0.0
    %602 = vmatprep.subr.mxu0 0.0
    %603 = vmatpush1.msra.mxu0 0.0
    %604 = vmatprep.subr.mxu0 0.0
    %605 = vmatpush1.msra.mxu0 0.0
    %606 = vmatprep.subr.mxu0 0.0
    %607 = vmatpush1.msra.mxu0 0.0
    %608 = vmatprep.subr.mxu0 0.0
    %609 = vmatpush1.msra.mxu0 0.0
    %610 = vmatprep.subr.mxu0 0.0
    %611 = vmatpush1.msra.mxu0 0.0
    %612 = vmatprep.mubr.f32.mxu0 0.0
    %613 = vmatmul.mubr.f32.gmra.mrb[0].mxu0 %v546
    %v614 = vpop.f32.mrb[0].mxu0
    %v615 = vadd.f32 %v43, %v614
    %v616 = vpop.f32.mrb[0].mxu0
    %v617 = vadd.f32 %v47, %v616
    %618 = vdwg.mxu0
    %v621 = vcombine.low %v615, %v617
    %s623 = scalar_lea.vmem [#allocation2], 48
    %624 = vst.msk [vmem:[%s623] sm:$0xff] %vm131, %v621
    %s625 = scalar_lea.vmem %s0, 28
    %v626 = vld [vmem:[%s625] sm:$0xf]
    %v628 = vsel %vm50, %v626, 0
    %630 = vmatprep.subr.mxu0 %v34
    %631 = vmatpush1.msra.mxu0 %v33
    %632 = vmatprep.subr.mxu0 %v36
    %633 = vmatpush1.msra.mxu0 %v35
    %634 = vmatprep.subr.mxu0 0.0
    %635 = vmatpush1.msra.mxu0 0.0
    %636 = vmatprep.subr.mxu0 0.0
    %637 = vmatpush1.msra.mxu0 0.0
    %638 = vmatprep.subr.mxu0 0.0
    %639 = vmatpush1.msra.mxu0 0.0
    %640 = vmatprep.subr.mxu0 0.0
    %641 = vmatpush1.msra.mxu0 0.0
    %642 = vmatprep.subr.mxu0 0.0
    %643 = vmatpush1.msra.mxu0 0.0
    %644 = vmatprep.subr.mxu0 0.0
    %645 = vmatpush1.msra.mxu0 0.0
    %646 = vmatprep.subr.mxu0 0.0
    %647 = vmatpush1.msra.mxu0 0.0
    %648 = vmatprep.subr.mxu0 0.0
    %649 = vmatpush1.msra.mxu0 0.0
    %650 = vmatprep.subr.mxu0 0.0
    %651 = vmatpush1.msra.mxu0 0.0
    %652 = vmatprep.subr.mxu0 0.0
    %653 = vmatpush1.msra.mxu0 0.0
    %654 = vmatprep.subr.mxu0 0.0
    %655 = vmatpush1.msra.mxu0 0.0
    %656 = vmatprep.subr.mxu0 0.0
    %657 = vmatpush1.msra.mxu0 0.0
    %658 = vmatprep.subr.mxu0 0.0
    %659 = vmatpush1.msra.mxu0 0.0
    %660 = vmatprep.subr.mxu0 0.0
    %661 = vmatpush1.msra.mxu0 0.0
    %662 = vmatprep.subr.mxu0 0.0
    %663 = vmatpush1.msra.mxu0 0.0
    %664 = vmatprep.subr.mxu0 0.0
    %665 = vmatpush1.msra.mxu0 0.0
    %666 = vmatprep.subr.mxu0 0.0
    %667 = vmatpush1.msra.mxu0 0.0
    %668 = vmatprep.subr.mxu0 0.0
    %669 = vmatpush1.msra.mxu0 0.0
    %670 = vmatprep.subr.mxu0 0.0
    %671 = vmatpush1.msra.mxu0 0.0
    %672 = vmatprep.subr.mxu0 0.0
    %673 = vmatpush1.msra.mxu0 0.0
    %674 = vmatprep.subr.mxu0 0.0
    %675 = vmatpush1.msra.mxu0 0.0
    %676 = vmatprep.subr.mxu0 0.0
    %677 = vmatpush1.msra.mxu0 0.0
    %678 = vmatprep.subr.mxu0 0.0
    %679 = vmatpush1.msra.mxu0 0.0
    %680 = vmatprep.subr.mxu0 0.0
    %681 = vmatpush1.msra.mxu0 0.0
    %682 = vmatprep.subr.mxu0 0.0
    %683 = vmatpush1.msra.mxu0 0.0
    %684 = vmatprep.subr.mxu0 0.0
    %685 = vmatpush1.msra.mxu0 0.0
    %686 = vmatprep.subr.mxu0 0.0
    %687 = vmatpush1.msra.mxu0 0.0
    %688 = vmatprep.subr.mxu0 0.0
    %689 = vmatpush1.msra.mxu0 0.0
    %690 = vmatprep.subr.mxu0 0.0
    %691 = vmatpush1.msra.mxu0 0.0
    %692 = vmatprep.subr.mxu0 0.0
    %693 = vmatpush1.msra.mxu0 0.0
    %694 = vmatprep.mubr.f32.mxu0 0.0
    %695 = vmatmul.mubr.f32.gmra.mrb[0].mxu0 %v628
    %v696 = vpop.f32.mrb[0].mxu0
    %v697 = vadd.f32 %v43, %v696
    %v698 = vpop.f32.mrb[0].mxu0
    %v699 = vadd.f32 %v47, %v698
    %700 = vdwg.mxu0
    %v703 = vcombine.low %v697, %v699
    %s705 = scalar_lea.vmem [#allocation2], 56
    %706 = vst.msk [vmem:[%s705] sm:$0xff] %vm131, %v703
    %v707 = vld [vmem:[%s2] sm:$0xff]
    %v708 = vld [vmem:[%s2 + $0x8] sm:$0xff]
    %v709 = vld [vmem:[%s2 + $0x10] sm:$0xff]
    %v710 = vld [vmem:[%s2 + $0x18] sm:$0xff]
    %v711 = vld [vmem:[%s2 + $0x20] sm:$0xff]
    %v712 = vld [vmem:[%s2 + $0x28] sm:$0xff]
    %v713 = vld [vmem:[%s2 + $0x30] sm:$0xff]
    %v714 = vld [vmem:[%s2 + $0x38] sm:$0xff]
    %v715 = vld [vmem:[%s2 + $0x40] sm:$0xff]
    %v716 = vld [vmem:[%s2 + $0x48] sm:$0xff]
    %v717 = vld [vmem:[%s2 + $0x50] sm:$0xff]
    %v718 = vld [vmem:[%s2 + $0x58] sm:$0xff]
    %v719 = vld [vmem:[%s2 + $0x60] sm:$0xff]
    %v720 = vld [vmem:[%s2 + $0x68] sm:$0xff]
    %v721 = vld [vmem:[%s2 + $0x70] sm:$0xff]
    %v722 = vld [vmem:[%s2 + $0x78] sm:$0xff]
    %v723 = vld [vmem:[%s4] sm:$0x1]
    %v725 = vlaneseq
    %v726 = vshrl.u32 %v725, 7
    %v727 = vsub.s32 0, %v726
    %v728 = vrot.slane %v723, %v727
    %v730 = vld [vmem:[%s5] sm:$0x3]
    %vm731 = vcmp.gt.f32.partialorder %v730, 0.5
    %v732 = vsel %vm731, 1, 0
    %v733 = vlaneseq
    %v734 = vshrl.u32 %v733, 7
    %v735 = vsub.s32 0, %v734
    %v736 = vrot.slane %v732, %v735
    %v737 = vlaneseq
    %v738 = vshrl.u32 %v737, 7
    %v739 = vsub.s32 1, %v738
    %v740 = vrot.slane %v732, %v739
    %vm741 = vcmp.eq.s32.totalorder %v736, 1
    %vm742 = vcmp.eq.s32.totalorder %v740, 1
    %v743 = vld [vmem:[#allocation2] sm:$0xff]
    %v744 = vld [vmem:[%s705] sm:$0xff]
    %v746 = vcombine.high %v743, %v743
    %v749 = vcombine.high %v744, %v744
    %v751 = vsel %vm741, %v743, %v744
    %v752 = vsel %vm742, %v746, %v749
    %vm753 = vcmask 523264
    %v755 = vsel %vm753, 0.0, 0
    %757 = vmatprep.subr.mxu0 %v708
    %758 = vmatpush1.msra.mxu0 %v707
    %759 = vmatprep.subr.mxu0 %v710
    %760 = vmatpush1.msra.mxu0 %v709
    %761 = vmatprep.subr.mxu0 %v712
    %762 = vmatpush1.msra.mxu0 %v711
    %763 = vmatprep.subr.mxu0 %v714
    %764 = vmatpush1.msra.mxu0 %v713
    %765 = vmatprep.subr.mxu0 %v716
    %766 = vmatpush1.msra.mxu0 %v715
    %767 = vmatprep.subr.mxu0 %v718
    %768 = vmatpush1.msra.mxu0 %v717
    %769 = vmatprep.subr.mxu0 %v720
    %770 = vmatpush1.msra.mxu0 %v719
    %771 = vmatprep.subr.mxu0 %v722
    %772 = vmatpush1.msra.mxu0 %v721
    %773 = vmatprep.subr.mxu0 0.0
    %774 = vmatpush1.msra.mxu0 0.0
    %775 = vmatprep.subr.mxu0 0.0
    %776 = vmatpush1.msra.mxu0 0.0
    %777 = vmatprep.subr.mxu0 0.0
    %778 = vmatpush1.msra.mxu0 0.0
    %779 = vmatprep.subr.mxu0 0.0
    %780 = vmatpush1.msra.mxu0 0.0
    %781 = vmatprep.subr.mxu0 0.0
    %782 = vmatpush1.msra.mxu0 0.0
    %783 = vmatprep.subr.mxu0 0.0
    %784 = vmatpush1.msra.mxu0 0.0
    %785 = vmatprep.subr.mxu0 0.0
    %786 = vmatpush1.msra.mxu0 0.0
    %787 = vmatprep.subr.mxu0 0.0
    %788 = vmatpush1.msra.mxu0 0.0
    %789 = vmatprep.subr.mxu0 0.0
    %790 = vmatpush1.msra.mxu0 0.0
    %791 = vmatprep.subr.mxu0 0.0
    %792 = vmatpush1.msra.mxu0 0.0
    %793 = vmatprep.subr.mxu0 0.0
    %794 = vmatpush1.msra.mxu0 0.0
    %795 = vmatprep.subr.mxu0 0.0
    %796 = vmatpush1.msra.mxu0 0.0
    %797 = vmatprep.subr.mxu0 0.0
    %798 = vmatpush1.msra.mxu0 0.0
    %799 = vmatprep.subr.mxu0 0.0
    %800 = vmatpush1.msra.mxu0 0.0
    %801 = vmatprep.subr.mxu0 0.0
    %802 = vmatpush1.msra.mxu0 0.0
    %803 = vmatprep.subr.mxu0 0.0
    %804 = vmatpush1.msra.mxu0 0.0
    %805 = vmatprep.subr.mxu0 0.0
    %806 = vmatpush1.msra.mxu0 0.0
    %807 = vmatprep.subr.mxu0 0.0
    %808 = vmatpush1.msra.mxu0 0.0
    %809 = vmatprep.subr.mxu0 0.0
    %810 = vmatpush1.msra.mxu0 0.0
    %811 = vmatprep.subr.mxu0 0.0
    %812 = vmatpush1.msra.mxu0 0.0
    %813 = vmatprep.subr.mxu0 0.0
    %814 = vmatpush1.msra.mxu0 0.0
    %815 = vmatprep.subr.mxu0 0.0
    %816 = vmatpush1.msra.mxu0 0.0
    %817 = vmatprep.subr.mxu0 0.0
    %818 = vmatpush1.msra.mxu0 0.0
    %819 = vmatprep.subr.mxu0 0.0
    %820 = vmatpush1.msra.mxu0 0.0
    %821 = vmatprep.mubr.f32.mxu0 0.0
    %822 = vmatmul.mubr.f32.gmra.mrb[0].mxu0 %v755
    %v823 = vpop.f32.mrb[0].mxu0
    %v824 = vadd.f32 0.0, %v823
    %v825 = vpop.f32.mrb[0].mxu0
    %v826 = vadd.f32 0.0, %v825
    %827 = vdwg.mxu0
    %v828 = vadd.f32 %v751, %v824
    %v829 = vxor.u32 %v828, 2147483648
    %v830 = vmul.f32 %v829, 1.442695
    %v831 = vpow.pop %v830
    %v832 = vadd.f32 %v831, 1.0
    %v833 = vrcp.pop %v832
    %v834 = vmul.f32 1.0, %v833
    %v835 = vadd.f32 %v826, %v728
    %v836 = vmul.f32 %v834, %v835
    %v837 = vadd.f32 %v752, %v836
    %v838 = vtanh.pop %v837
    %v839 = vsub.f32 1.0, %v834
    %841 = vrot.lane.b32.xlu0 %v838, 64
    %v842 = vpop.permute.xlu0 %841
    %v844 = vmul.f32 %v839, %v842
    %v845 = vmul.f32 %v834, 0.0
    %v846 = vadd.f32 %v844, %v845
    %848 = vrot.lane.b32.xlu0 %v846, 64
    %v849 = vpop.permute.xlu0 %848
    %vm851 = vcmask 257024
    %852 = vst.msk [vmem:[#allocation3] sm:$0xf] %vm851, %v849
    %s853 = scalar_lea.vmem [#allocation3], 28
    %vm854 = vcmask 519424
    %855 = vst.msk [vmem:[%s853] sm:$0xf] %vm854, %v849
    %v856 = vld [vmem:[%s213] sm:$0xff]
    %v857 = vld [vmem:[%s623] sm:$0xff]
    %v859 = vcombine.high %v856, %v856
    %v862 = vcombine.high %v857, %v857
    %v864 = vsel %vm741, %v856, %v857
    %v865 = vsel %vm742, %v859, %v862
    %v866 = vsel %vm753, %v849, 0
    %868 = vmatprep.subr.mxu0 %v708
    %869 = vmatpush1.msra.mxu0 %v707
    %870 = vmatprep.subr.mxu0 %v710
    %871 = vmatpush1.msra.mxu0 %v709
    %872 = vmatprep.subr.mxu0 %v712
    %873 = vmatpush1.msra.mxu0 %v711
    %874 = vmatprep.subr.mxu0 %v714
    %875 = vmatpush1.msra.mxu0 %v713
    %876 = vmatprep.subr.mxu0 %v716
    %877 = vmatpush1.msra.mxu0 %v715
    %878 = vmatprep.subr.mxu0 %v718
    %879 = vmatpush1.msra.mxu0 %v717
    %880 = vmatprep.subr.mxu0 %v720
    %881 = vmatpush1.msra.mxu0 %v719
    %882 = vmatprep.subr.mxu0 %v722
    %883 = vmatpush1.msra.mxu0 %v721
    %884 = vmatprep.subr.mxu0 0.0
    %885 = vmatpush1.msra.mxu0 0.0
    %886 = vmatprep.subr.mxu0 0.0
    %887 = vmatpush1.msra.mxu0 0.0
    %888 = vmatprep.subr.mxu0 0.0
    %889 = vmatpush1.msra.mxu0 0.0
    %890 = vmatprep.subr.mxu0 0.0
    %891 = vmatpush1.msra.mxu0 0.0
    %892 = vmatprep.subr.mxu0 0.0
    %893 = vmatpush1.msra.mxu0 0.0
    %894 = vmatprep.subr.mxu0 0.0
    %895 = vmatpush1.msra.mxu0 0.0
    %896 = vmatprep.subr.mxu0 0.0
    %897 = vmatpush1.msra.mxu0 0.0
    %898 = vmatprep.subr.mxu0 0.0
    %899 = vmatpush1.msra.mxu0 0.0
    %900 = vmatprep.subr.mxu0 0.0
    %901 = vmatpush1.msra.mxu0 0.0
    %902 = vmatprep.subr.mxu0 0.0
    %903 = vmatpush1.msra.mxu0 0.0
    %904 = vmatprep.subr.mxu0 0.0
    %905 = vmatpush1.msra.mxu0 0.0
    %906 = vmatprep.subr.mxu0 0.0
    %907 = vmatpush1.msra.mxu0 0.0
    %908 = vmatprep.subr.mxu0 0.0
    %909 = vmatpush1.msra.mxu0 0.0
    %910 = vmatprep.subr.mxu0 0.0
    %911 = vmatpush1.msra.mxu0 0.0
    %912 = vmatprep.subr.mxu0 0.0
    %913 = vmatpush1.msra.mxu0 0.0
    %914 = vmatprep.subr.mxu0 0.0
    %915 = vmatpush1.msra.mxu0 0.0
    %916 = vmatprep.subr.mxu0 0.0
    %917 = vmatpush1.msra.mxu0 0.0
    %918 = vmatprep.subr.mxu0 0.0
    %919 = vmatpush1.msra.mxu0 0.0
    %920 = vmatprep.subr.mxu0 0.0
    %921 = vmatpush1.msra.mxu0 0.0
    %922 = vmatprep.subr.mxu0 0.0
    %923 = vmatpush1.msra.mxu0 0.0
    %924 = vmatprep.subr.mxu0 0.0
    %925 = vmatpush1.msra.mxu0 0.0
    %926 = vmatprep.subr.mxu0 0.0
    %927 = vmatpush1.msra.mxu0 0.0
    %928 = vmatprep.subr.mxu0 0.0
    %929 = vmatpush1.msra.mxu0 0.0
    %930 = vmatprep.subr.mxu0 0.0
    %931 = vmatpush1.msra.mxu0 0.0
    %932 = vmatprep.mubr.f32.mxu0 0.0
    %933 = vmatmul.mubr.f32.gmra.mrb[0].mxu0 %v866
    %v934 = vpop.f32.mrb[0].mxu0
    %v935 = vadd.f32 0.0, %v934
    %v936 = vpop.f32.mrb[0].mxu0
    %v937 = vadd.f32 0.0, %v936
    %938 = vdwg.mxu0
    %v939 = vadd.f32 %v864, %v935
    %v940 = vxor.u32 %v939, 2147483648
    %v941 = vmul.f32 %v940, 1.442695
    %v942 = vpow.pop %v941
    %v943 = vadd.f32 %v942, 1.0
    %v944 = vrcp.pop %v943
    %v945 = vmul.f32 1.0, %v944
    %v946 = vadd.f32 %v937, %v728
    %v947 = vmul.f32 %v945, %v946
    %v948 = vadd.f32 %v865, %v947
    %v949 = vtanh.pop %v948
    %v950 = vsub.f32 1.0, %v945
    %952 = vrot.lane.b32.xlu0 %v949, 64
    %v953 = vpop.permute.xlu0 %952
    %v955 = vmul.f32 %v950, %v953
    %v956 = vmul.f32 %v945, %v846
    %v957 = vadd.f32 %v955, %v956
    %959 = vrot.lane.b32.xlu0 %v957, 64
    %v960 = vpop.permute.xlu0 %959
    %s962 = scalar_lea.vmem [#allocation3], 4
    %963 = vst.msk [vmem:[%s962] sm:$0xf] %vm851, %v960
    %s964 = scalar_lea.vmem [#allocation3], 24
    %965 = vst.msk [vmem:[%s964] sm:$0xf] %vm854, %v960
    %v966 = vld [vmem:[%s295] sm:$0xff]
    %v967 = vld [vmem:[%s541] sm:$0xff]
    %v969 = vcombine.high %v966, %v966
    %v972 = vcombine.high %v967, %v967
    %v974 = vsel %vm741, %v966, %v967
    %v975 = vsel %vm742, %v969, %v972
    %v976 = vsel %vm753, %v960, 0
    %978 = vmatprep.subr.mxu0 %v708
    %979 = vmatpush1.msra.mxu0 %v707
    %980 = vmatprep.subr.mxu0 %v710
    %981 = vmatpush1.msra.mxu0 %v709
    %982 = vmatprep.subr.mxu0 %v712
    %983 = vmatpush1.msra.mxu0 %v711
    %984 = vmatprep.subr.mxu0 %v714
    %985 = vmatpush1.msra.mxu0 %v713
    %986 = vmatprep.subr.mxu0 %v716
    %987 = vmatpush1.msra.mxu0 %v715
    %988 = vmatprep.subr.mxu0 %v718
    %989 = vmatpush1.msra.mxu0 %v717
    %990 = vmatprep.subr.mxu0 %v720
    %991 = vmatpush1.msra.mxu0 %v719
    %992 = vmatprep.subr.mxu0 %v722
    %993 = vmatpush1.msra.mxu0 %v721
    %994 = vmatprep.subr.mxu0 0.0
    %995 = vmatpush1.msra.mxu0 0.0
    %996 = vmatprep.subr.mxu0 0.0
    %997 = vmatpush1.msra.mxu0 0.0
    %998 = vmatprep.subr.mxu0 0.0
    %999 = vmatpush1.msra.mxu0 0.0
    %1000 = vmatprep.subr.mxu0 0.0
    %1001 = vmatpush1.msra.mxu0 0.0
    %1002 = vmatprep.subr.mxu0 0.0
    %1003 = vmatpush1.msra.mxu0 0.0
    %1004 = vmatprep.subr.mxu0 0.0
    %1005 = vmatpush1.msra.mxu0 0.0
    %1006 = vmatprep.subr.mxu0 0.0
    %1007 = vmatpush1.msra.mxu0 0.0
    %1008 = vmatprep.subr.mxu0 0.0
    %1009 = vmatpush1.msra.mxu0 0.0
    %1010 = vmatprep.subr.mxu0 0.0
    %1011 = vmatpush1.msra.mxu0 0.0
    %1012 = vmatprep.subr.mxu0 0.0
    %1013 = vmatpush1.msra.mxu0 0.0
    %1014 = vmatprep.subr.mxu0 0.0
    %1015 = vmatpush1.msra.mxu0 0.0
    %1016 = vmatprep.subr.mxu0 0.0
    %1017 = vmatpush1.msra.mxu0 0.0
    %1018 = vmatprep.subr.mxu0 0.0
    %1019 = vmatpush1.msra.mxu0 0.0
    %1020 = vmatprep.subr.mxu0 0.0
    %1021 = vmatpush1.msra.mxu0 0.0
    %1022 = vmatprep.subr.mxu0 0.0
    %1023 = vmatpush1.msra.mxu0 0.0
    %1024 = vmatprep.subr.mxu0 0.0
    %1025 = vmatpush1.msra.mxu0 0.0
    %1026 = vmatprep.subr.mxu0 0.0
    %1027 = vmatpush1.msra.mxu0 0.0
    %1028 = vmatprep.subr.mxu0 0.0
    %1029 = vmatpush1.msra.mxu0 0.0
    %1030 = vmatprep.subr.mxu0 0.0
    %1031 = vmatpush1.msra.mxu0 0.0
    %1032 = vmatprep.subr.mxu0 0.0
    %1033 = vmatpush1.msra.mxu0 0.0
    %1034 = vmatprep.subr.mxu0 0.0
    %1035 = vmatpush1.msra.mxu0 0.0
    %1036 = vmatprep.subr.mxu0 0.0
    %1037 = vmatpush1.msra.mxu0 0.0
    %1038 = vmatprep.subr.mxu0 0.0
    %1039 = vmatpush1.msra.mxu0 0.0
    %1040 = vmatprep.subr.mxu0 0.0
    %1041 = vmatpush1.msra.mxu0 0.0
    %1042 = vmatprep.mubr.f32.mxu0 0.0
    %1043 = vmatmul.mubr.f32.gmra.mrb[0].mxu0 %v976
    %v1044 = vpop.f32.mrb[0].mxu0
    %v1045 = vadd.f32 0.0, %v1044
    %v1046 = vpop.f32.mrb[0].mxu0
    %v1047 = vadd.f32 0.0, %v1046
    %1048 = vdwg.mxu0
    %v1049 = vadd.f32 %v974, %v1045
    %v1050 = vxor.u32 %v1049, 2147483648
    %v1051 = vmul.f32 %v1050, 1.442695
    %v1052 = vpow.pop %v1051
    %v1053 = vadd.f32 %v1052, 1.0
    %v1054 = vrcp.pop %v1053
    %v1055 = vmul.f32 1.0, %v1054
    %v1056 = vadd.f32 %v1047, %v728
    %v1057 = vmul.f32 %v1055, %v1056
    %v1058 = vadd.f32 %v975, %v1057
    %v1059 = vtanh.pop %v1058
    %v1060 = vsub.f32 1.0, %v1055
    %1062 = vrot.lane.b32.xlu0 %v1059, 64
    %v1063 = vpop.permute.xlu0 %1062
    %v1065 = vmul.f32 %v1060, %v1063
    %v1066 = vmul.f32 %v1055, %v957
    %v1067 = vadd.f32 %v1065, %v1066
    %1069 = vrot.lane.b32.xlu0 %v1067, 64
    %v1070 = vpop.permute.xlu0 %1069
    %s1072 = scalar_lea.vmem [#allocation3], 8
    %1073 = vst.msk [vmem:[%s1072] sm:$0xf] %vm851, %v1070
    %s1074 = scalar_lea.vmem [#allocation3], 20
    %1075 = vst.msk [vmem:[%s1074] sm:$0xf] %vm854, %v1070
    %v1076 = vld [vmem:[%s377] sm:$0xff]
    %v1077 = vld [vmem:[%s459] sm:$0xff]
    %v1079 = vcombine.high %v1076, %v1076
    %v1082 = vcombine.high %v1077, %v1077
    %v1084 = vsel %vm741, %v1076, %v1077
    %v1085 = vsel %vm742, %v1079, %v1082
    %v1086 = vsel %vm753, %v1070, 0
    %1088 = vmatprep.subr.mxu0 %v708
    %1089 = vmatpush1.msra.mxu0 %v707
    %1090 = vmatprep.subr.mxu0 %v710
    %1091 = vmatpush1.msra.mxu0 %v709
    %1092 = vmatprep.subr.mxu0 %v712
    %1093 = vmatpush1.msra.mxu0 %v711
    %1094 = vmatprep.subr.mxu0 %v714
    %1095 = vmatpush1.msra.mxu0 %v713
    %1096 = vmatprep.subr.mxu0 %v716
    %1097 = vmatpush1.msra.mxu0 %v715
    %1098 = vmatprep.subr.mxu0 %v718
    %1099 = vmatpush1.msra.mxu0 %v717
    %1100 = vmatprep.subr.mxu0 %v720
    %1101 = vmatpush1.msra.mxu0 %v719
    %1102 = vmatprep.subr.mxu0 %v722
    %1103 = vmatpush1.msra.mxu0 %v721
    %1104 = vmatprep.subr.mxu0 0.0
    %1105 = vmatpush1.msra.mxu0 0.0
    %1106 = vmatprep.subr.mxu0 0.0
    %1107 = vmatpush1.msra.mxu0 0.0
    %1108 = vmatprep.subr.mxu0 0.0
    %1109 = vmatpush1.msra.mxu0 0.0
    %1110 = vmatprep.subr.mxu0 0.0
    %1111 = vmatpush1.msra.mxu0 0.0
    %1112 = vmatprep.subr.mxu0 0.0
    %1113 = vmatpush1.msra.mxu0 0.0
    %1114 = vmatprep.subr.mxu0 0.0
    %1115 = vmatpush1.msra.mxu0 0.0
    %1116 = vmatprep.subr.mxu0 0.0
    %1117 = vmatpush1.msra.mxu0 0.0
    %1118 = vmatprep.subr.mxu0 0.0
    %1119 = vmatpush1.msra.mxu0 0.0
    %1120 = vmatprep.subr.mxu0 0.0
    %1121 = vmatpush1.msra.mxu0 0.0
    %1122 = vmatprep.subr.mxu0 0.0
    %1123 = vmatpush1.msra.mxu0 0.0
    %1124 = vmatprep.subr.mxu0 0.0
    %1125 = vmatpush1.msra.mxu0 0.0
    %1126 = vmatprep.subr.mxu0 0.0
    %1127 = vmatpush1.msra.mxu0 0.0
    %1128 = vmatprep.subr.mxu0 0.0
    %1129 = vmatpush1.msra.mxu0 0.0
    %1130 = vmatprep.subr.mxu0 0.0
    %1131 = vmatpush1.msra.mxu0 0.0
    %1132 = vmatprep.subr.mxu0 0.0
    %1133 = vmatpush1.msra.mxu0 0.0
    %1134 = vmatprep.subr.mxu0 0.0
    %1135 = vmatpush1.msra.mxu0 0.0
    %1136 = vmatprep.subr.mxu0 0.0
    %1137 = vmatpush1.msra.mxu0 0.0
    %1138 = vmatprep.subr.mxu0 0.0
    %1139 = vmatpush1.msra.mxu0 0.0
    %1140 = vmatprep.subr.mxu0 0.0
    %1141 = vmatpush1.msra.mxu0 0.0
    %1142 = vmatprep.subr.mxu0 0.0
    %1143 = vmatpush1.msra.mxu0 0.0
    %1144 = vmatprep.subr.mxu0 0.0
    %1145 = vmatpush1.msra.mxu0 0.0
    %1146 = vmatprep.subr.mxu0 0.0
    %1147 = vmatpush1.msra.mxu0 0.0
    %1148 = vmatprep.subr.mxu0 0.0
    %1149 = vmatpush1.msra.mxu0 0.0
    %1150 = vmatprep.subr.mxu0 0.0
    %1151 = vmatpush1.msra.mxu0 0.0
    %1152 = vmatprep.mubr.f32.mxu0 0.0
    %1153 = vmatmul.mubr.f32.gmra.mrb[0].mxu0 %v1086
    %v1154 = vpop.f32.mrb[0].mxu0
    %v1155 = vadd.f32 0.0, %v1154
    %v1156 = vpop.f32.mrb[0].mxu0
    %v1157 = vadd.f32 0.0, %v1156
    %1158 = vdwg.mxu0
    %v1159 = vadd.f32 %v1084, %v1155
    %v1160 = vxor.u32 %v1159, 2147483648
    %v1161 = vmul.f32 %v1160, 1.442695
    %v1162 = vpow.pop %v1161
    %v1163 = vadd.f32 %v1162, 1.0
    %v1164 = vrcp.pop %v1163
    %v1165 = vmul.f32 1.0, %v1164
    %v1166 = vadd.f32 %v1157, %v728
    %v1167 = vmul.f32 %v1165, %v1166
    %v1168 = vadd.f32 %v1085, %v1167
    %v1169 = vtanh.pop %v1168
    %v1170 = vsub.f32 1.0, %v1165
    %1172 = vrot.lane.b32.xlu0 %v1169, 64
    %v1173 = vpop.permute.xlu0 %1172
    %v1175 = vmul.f32 %v1170, %v1173
    %v1176 = vmul.f32 %v1165, %v1067
    %v1177 = vadd.f32 %v1175, %v1176
    %1179 = vrot.lane.b32.xlu0 %v1177, 64
    %v1180 = vpop.permute.xlu0 %1179
    %s1182 = scalar_lea.vmem [#allocation3], 12
    %1183 = vst.msk [vmem:[%s1182] sm:$0xf] %vm851, %v1180
    %s1184 = scalar_lea.vmem [#allocation3], 16
    %1185 = vst.msk [vmem:[%s1184] sm:$0xf] %vm854, %v1180
    %v1186 = vld [vmem:[%s459] sm:$0xff]
    %v1187 = vld [vmem:[%s377] sm:$0xff]
    %v1189 = vcombine.high %v1186, %v1186
    %v1192 = vcombine.high %v1187, %v1187
    %v1194 = vsel %vm741, %v1186, %v1187
    %v1195 = vsel %vm742, %v1189, %v1192
    %v1196 = vsel %vm753, %v1180, 0
    %1198 = vmatprep.subr.mxu0 %v708
    %1199 = vmatpush1.msra.mxu0 %v707
    %1200 = vmatprep.subr.mxu0 %v710
    %1201 = vmatpush1.msra.mxu0 %v709
    %1202 = vmatprep.subr.mxu0 %v712
    %1203 = vmatpush1.msra.mxu0 %v711
    %1204 = vmatprep.subr.mxu0 %v714
    %1205 = vmatpush1.msra.mxu0 %v713
    %1206 = vmatprep.subr.mxu0 %v716
    %1207 = vmatpush1.msra.mxu0 %v715
    %1208 = vmatprep.subr.mxu0 %v718
    %1209 = vmatpush1.msra.mxu0 %v717
    %1210 = vmatprep.subr.mxu0 %v720
    %1211 = vmatpush1.msra.mxu0 %v719
    %1212 = vmatprep.subr.mxu0 %v722
    %1213 = vmatpush1.msra.mxu0 %v721
    %1214 = vmatprep.subr.mxu0 0.0
    %1215 = vmatpush1.msra.mxu0 0.0
    %1216 = vmatprep.subr.mxu0 0.0
    %1217 = vmatpush1.msra.mxu0 0.0
    %1218 = vmatprep.subr.mxu0 0.0
    %1219 = vmatpush1.msra.mxu0 0.0
    %1220 = vmatprep.subr.mxu0 0.0
    %1221 = vmatpush1.msra.mxu0 0.0
    %1222 = vmatprep.subr.mxu0 0.0
    %1223 = vmatpush1.msra.mxu0 0.0
    %1224 = vmatprep.subr.mxu0 0.0
    %1225 = vmatpush1.msra.mxu0 0.0
    %1226 = vmatprep.subr.mxu0 0.0
    %1227 = vmatpush1.msra.mxu0 0.0
    %1228 = vmatprep.subr.mxu0 0.0
    %1229 = vmatpush1.msra.mxu0 0.0
    %1230 = vmatprep.subr.mxu0 0.0
    %1231 = vmatpush1.msra.mxu0 0.0
    %1232 = vmatprep.subr.mxu0 0.0
    %1233 = vmatpush1.msra.mxu0 0.0
    %1234 = vmatprep.subr.mxu0 0.0
    %1235 = vmatpush1.msra.mxu0 0.0
    %1236 = vmatprep.subr.mxu0 0.0
    %1237 = vmatpush1.msra.mxu0 0.0
    %1238 = vmatprep.subr.mxu0 0.0
    %1239 = vmatpush1.msra.mxu0 0.0
    %1240 = vmatprep.subr.mxu0 0.0
    %1241 = vmatpush1.msra.mxu0 0.0
    %1242 = vmatprep.subr.mxu0 0.0
    %1243 = vmatpush1.msra.mxu0 0.0
    %1244 = vmatprep.subr.mxu0 0.0
    %1245 = vmatpush1.msra.mxu0 0.0
    %1246 = vmatprep.subr.mxu0 0.0
    %1247 = vmatpush1.msra.mxu0 0.0
    %1248 = vmatprep.subr.mxu0 0.0
    %1249 = vmatpush1.msra.mxu0 0.0
    %1250 = vmatprep.subr.mxu0 0.0
    %1251 = vmatpush1.msra.mxu0 0.0
    %1252 = vmatprep.subr.mxu0 0.0
    %1253 = vmatpush1.msra.mxu0 0.0
    %1254 = vmatprep.subr.mxu0 0.0
    %1255 = vmatpush1.msra.mxu0 0.0
    %1256 = vmatprep.subr.mxu0 0.0
    %1257 = vmatpush1.msra.mxu0 0.0
    %1258 = vmatprep.subr.mxu0 0.0
    %1259 = vmatpush1.msra.mxu0 0.0
    %1260 = vmatprep.subr.mxu0 0.0
    %1261 = vmatpush1.msra.mxu0 0.0
    %1262 = vmatprep.mubr.f32.mxu0 0.0
    %1263 = vmatmul.mubr.f32.gmra.mrb[0].mxu0 %v1196
    %v1264 = vpop.f32.mrb[0].mxu0
    %v1265 = vadd.f32 0.0, %v1264
    %v1266 = vpop.f32.mrb[0].mxu0
    %v1267 = vadd.f32 0.0, %v1266
    %1268 = vdwg.mxu0
    %v1269 = vadd.f32 %v1194, %v1265
    %v1270 = vxor.u32 %v1269, 2147483648
    %v1271 = vmul.f32 %v1270, 1.442695
    %v1272 = vpow.pop %v1271
    %v1273 = vadd.f32 %v1272, 1.0
    %v1274 = vrcp.pop %v1273
    %v1275 = vmul.f32 1.0, %v1274
    %v1276 = vadd.f32 %v1267, %v728
    %v1277 = vmul.f32 %v1275, %v1276
    %v1278 = vadd.f32 %v1195, %v1277
    %v1279 = vtanh.pop %v1278
    %v1280 = vsub.f32 1.0, %v1275
    %1282 = vrot.lane.b32.xlu0 %v1279, 64
    %v1283 = vpop.permute.xlu0 %1282
    %v1285 = vmul.f32 %v1280, %v1283
    %v1286 = vmul.f32 %v1275, %v1177
    %v1287 = vadd.f32 %v1285, %v1286
    %1289 = vrot.lane.b32.xlu0 %v1287, 64
    %v1290 = vpop.permute.xlu0 %1289
    %1292 = vst.msk [vmem:[%s1184] sm:$0xf] %vm851, %v1290
    %1293 = vst.msk [vmem:[%s1182] sm:$0xf] %vm854, %v1290
    %v1294 = vld [vmem:[%s541] sm:$0xff]
    %v1295 = vld [vmem:[%s295] sm:$0xff]
    %v1297 = vcombine.high %v1294, %v1294
    %v1300 = vcombine.high %v1295, %v1295
    %v1302 = vsel %vm741, %v1294, %v1295
    %v1303 = vsel %vm742, %v1297, %v1300
    %v1304 = vsel %vm753, %v1290, 0
    %1306 = vmatprep.subr.mxu0 %v708
    %1307 = vmatpush1.msra.mxu0 %v707
    %1308 = vmatprep.subr.mxu0 %v710
    %1309 = vmatpush1.msra.mxu0 %v709
    %1310 = vmatprep.subr.mxu0 %v712
    %1311 = vmatpush1.msra.mxu0 %v711
    %1312 = vmatprep.subr.mxu0 %v714
    %1313 = vmatpush1.msra.mxu0 %v713
    %1314 = vmatprep.subr.mxu0 %v716
    %1315 = vmatpush1.msra.mxu0 %v715
    %1316 = vmatprep.subr.mxu0 %v718
    %1317 = vmatpush1.msra.mxu0 %v717
    %1318 = vmatprep.subr.mxu0 %v720
    %1319 = vmatpush1.msra.mxu0 %v719
    %1320 = vmatprep.subr.mxu0 %v722
    %1321 = vmatpush1.msra.mxu0 %v721
    %1322 = vmatprep.subr.mxu0 0.0
    %1323 = vmatpush1.msra.mxu0 0.0
    %1324 = vmatprep.subr.mxu0 0.0
    %1325 = vmatpush1.msra.mxu0 0.0
    %1326 = vmatprep.subr.mxu0 0.0
    %1327 = vmatpush1.msra.mxu0 0.0
    %1328 = vmatprep.subr.mxu0 0.0
    %1329 = vmatpush1.msra.mxu0 0.0
    %1330 = vmatprep.subr.mxu0 0.0
    %1331 = vmatpush1.msra.mxu0 0.0
    %1332 = vmatprep.subr.mxu0 0.0
    %1333 = vmatpush1.msra.mxu0 0.0
    %1334 = vmatprep.subr.mxu0 0.0
    %1335 = vmatpush1.msra.mxu0 0.0
    %1336 = vmatprep.subr.mxu0 0.0
    %1337 = vmatpush1.msra.mxu0 0.0
    %1338 = vmatprep.subr.mxu0 0.0
    %1339 = vmatpush1.msra.mxu0 0.0
    %1340 = vmatprep.subr.mxu0 0.0
    %1341 = vmatpush1.msra.mxu0 0.0
    %1342 = vmatprep.subr.mxu0 0.0
    %1343 = vmatpush1.msra.mxu0 0.0
    %1344 = vmatprep.subr.mxu0 0.0
    %1345 = vmatpush1.msra.mxu0 0.0
    %1346 = vmatprep.subr.mxu0 0.0
    %1347 = vmatpush1.msra.mxu0 0.0
    %1348 = vmatprep.subr.mxu0 0.0
    %1349 = vmatpush1.msra.mxu0 0.0
    %1350 = vmatprep.subr.mxu0 0.0
    %1351 = vmatpush1.msra.mxu0 0.0
    %1352 = vmatprep.subr.mxu0 0.0
    %1353 = vmatpush1.msra.mxu0 0.0
    %1354 = vmatprep.subr.mxu0 0.0
    %1355 = vmatpush1.msra.mxu0 0.0
    %1356 = vmatprep.subr.mxu0 0.0
    %1357 = vmatpush1.msra.mxu0 0.0
    %1358 = vmatprep.subr.mxu0 0.0
    %1359 = vmatpush1.msra.mxu0 0.0
    %1360 = vmatprep.subr.mxu0 0.0
    %1361 = vmatpush1.msra.mxu0 0.0
    %1362 = vmatprep.subr.mxu0 0.0
    %1363 = vmatpush1.msra.mxu0 0.0
    %1364 = vmatprep.subr.mxu0 0.0
    %1365 = vmatpush1.msra.mxu0 0.0
    %1366 = vmatprep.subr.mxu0 0.0
    %1367 = vmatpush1.msra.mxu0 0.0
    %1368 = vmatprep.subr.mxu0 0.0
    %1369 = vmatpush1.msra.mxu0 0.0
    %1370 = vmatprep.mubr.f32.mxu0 0.0
    %1371 = vmatmul.mubr.f32.gmra.mrb[0].mxu0 %v1304
    %v1372 = vpop.f32.mrb[0].mxu0
    %v1373 = vadd.f32 0.0, %v1372
    %v1374 = vpop.f32.mrb[0].mxu0
    %v1375 = vadd.f32 0.0, %v1374
    %1376 = vdwg.mxu0
    %v1377 = vadd.f32 %v1302, %v1373
    %v1378 = vxor.u32 %v1377, 2147483648
    %v1379 = vmul.f32 %v1378, 1.442695
    %v1380 = vpow.pop %v1379
    %v1381 = vadd.f32 %v1380, 1.0
    %v1382 = vrcp.pop %v1381
    %v1383 = vmul.f32 1.0, %v1382
    %v1384 = vadd.f32 %v1375, %v728
    %v1385 = vmul.f32 %v1383, %v1384
    %v1386 = vadd.f32 %v1303, %v1385
    %v1387 = vtanh.pop %v1386
    %v1388 = vsub.f32 1.0, %v1383
    %1390 = vrot.lane.b32.xlu0 %v1387, 64
    %v1391 = vpop.permute.xlu0 %1390
    %v1393 = vmul.f32 %v1388, %v1391
    %v1394 = vmul.f32 %v1383, %v1287
    %v1395 = vadd.f32 %v1393, %v1394
    %1397 = vrot.lane.b32.xlu0 %v1395, 64
    %v1398 = vpop.permute.xlu0 %1397
    %1400 = vst.msk [vmem:[%s1074] sm:$0xf] %vm851, %v1398
    %1401 = vst.msk [vmem:[%s1072] sm:$0xf] %vm854, %v1398
    %v1402 = vld [vmem:[%s623] sm:$0xff]
    %v1403 = vld [vmem:[%s213] sm:$0xff]
    %v1405 = vcombine.high %v1402, %v1402
    %v1408 = vcombine.high %v1403, %v1403
    %v1410 = vsel %vm741, %v1402, %v1403
    %v1411 = vsel %vm742, %v1405, %v1408
    %v1412 = vsel %vm753, %v1398, 0
    %1414 = vmatprep.subr.mxu0 %v708
    %1415 = vmatpush1.msra.mxu0 %v707
    %1416 = vmatprep.subr.mxu0 %v710
    %1417 = vmatpush1.msra.mxu0 %v709
    %1418 = vmatprep.subr.mxu0 %v712
    %1419 = vmatpush1.msra.mxu0 %v711
    %1420 = vmatprep.subr.mxu0 %v714
    %1421 = vmatpush1.msra.mxu0 %v713
    %1422 = vmatprep.subr.mxu0 %v716
    %1423 = vmatpush1.msra.mxu0 %v715
    %1424 = vmatprep.subr.mxu0 %v718
    %1425 = vmatpush1.msra.mxu0 %v717
    %1426 = vmatprep.subr.mxu0 %v720
    %1427 = vmatpush1.msra.mxu0 %v719
    %1428 = vmatprep.subr.mxu0 %v722
    %1429 = vmatpush1.msra.mxu0 %v721
    %1430 = vmatprep.subr.mxu0 0.0
    %1431 = vmatpush1.msra.mxu0 0.0
    %1432 = vmatprep.subr.mxu0 0.0
    %1433 = vmatpush1.msra.mxu0 0.0
    %1434 = vmatprep.subr.mxu0 0.0
    %1435 = vmatpush1.msra.mxu0 0.0
    %1436 = vmatprep.subr.mxu0 0.0
    %1437 = vmatpush1.msra.mxu0 0.0
    %1438 = vmatprep.subr.mxu0 0.0
    %1439 = vmatpush1.msra.mxu0 0.0
    %1440 = vmatprep.subr.mxu0 0.0
    %1441 = vmatpush1.msra.mxu0 0.0
    %1442 = vmatprep.subr.mxu0 0.0
    %1443 = vmatpush1.msra.mxu0 0.0
    %1444 = vmatprep.subr.mxu0 0.0
    %1445 = vmatpush1.msra.mxu0 0.0
    %1446 = vmatprep.subr.mxu0 0.0
    %1447 = vmatpush1.msra.mxu0 0.0
    %1448 = vmatprep.subr.mxu0 0.0
    %1449 = vmatpush1.msra.mxu0 0.0
    %1450 = vmatprep.subr.mxu0 0.0
    %1451 = vmatpush1.msra.mxu0 0.0
    %1452 = vmatprep.subr.mxu0 0.0
    %1453 = vmatpush1.msra.mxu0 0.0
    %1454 = vmatprep.subr.mxu0 0.0
    %1455 = vmatpush1.msra.mxu0 0.0
    %1456 = vmatprep.subr.mxu0 0.0
    %1457 = vmatpush1.msra.mxu0 0.0
    %1458 = vmatprep.subr.mxu0 0.0
    %1459 = vmatpush1.msra.mxu0 0.0
    %1460 = vmatprep.subr.mxu0 0.0
    %1461 = vmatpush1.msra.mxu0 0.0
    %1462 = vmatprep.subr.mxu0 0.0
    %1463 = vmatpush1.msra.mxu0 0.0
    %1464 = vmatprep.subr.mxu0 0.0
    %1465 = vmatpush1.msra.mxu0 0.0
    %1466 = vmatprep.subr.mxu0 0.0
    %1467 = vmatpush1.msra.mxu0 0.0
    %1468 = vmatprep.subr.mxu0 0.0
    %1469 = vmatpush1.msra.mxu0 0.0
    %1470 = vmatprep.subr.mxu0 0.0
    %1471 = vmatpush1.msra.mxu0 0.0
    %1472 = vmatprep.subr.mxu0 0.0
    %1473 = vmatpush1.msra.mxu0 0.0
    %1474 = vmatprep.subr.mxu0 0.0
    %1475 = vmatpush1.msra.mxu0 0.0
    %1476 = vmatprep.subr.mxu0 0.0
    %1477 = vmatpush1.msra.mxu0 0.0
    %1478 = vmatprep.mubr.f32.mxu0 0.0
    %1479 = vmatmul.mubr.f32.gmra.mrb[0].mxu0 %v1412
    %v1480 = vpop.f32.mrb[0].mxu0
    %v1481 = vadd.f32 0.0, %v1480
    %v1482 = vpop.f32.mrb[0].mxu0
    %v1483 = vadd.f32 0.0, %v1482
    %1484 = vdwg.mxu0
    %v1485 = vadd.f32 %v1410, %v1481
    %v1486 = vxor.u32 %v1485, 2147483648
    %v1487 = vmul.f32 %v1486, 1.442695
    %v1488 = vpow.pop %v1487
    %v1489 = vadd.f32 %v1488, 1.0
    %v1490 = vrcp.pop %v1489
    %v1491 = vmul.f32 1.0, %v1490
    %v1492 = vadd.f32 %v1483, %v728
    %v1493 = vmul.f32 %v1491, %v1492
    %v1494 = vadd.f32 %v1411, %v1493
    %v1495 = vtanh.pop %v1494
    %v1496 = vsub.f32 1.0, %v1491
    %1498 = vrot.lane.b32.xlu0 %v1495, 64
    %v1499 = vpop.permute.xlu0 %1498
    %v1501 = vmul.f32 %v1496, %v1499
    %v1502 = vmul.f32 %v1491, %v1395
    %v1503 = vadd.f32 %v1501, %v1502
    %1505 = vrot.lane.b32.xlu0 %v1503, 64
    %v1506 = vpop.permute.xlu0 %1505
    %1508 = vst.msk [vmem:[%s964] sm:$0xf] %vm851, %v1506
    %1509 = vst.msk [vmem:[%s962] sm:$0xf] %vm854, %v1506
    %v1510 = vld [vmem:[%s705] sm:$0xff]
    %v1511 = vld [vmem:[#allocation2] sm:$0xff]
    %v1513 = vcombine.high %v1510, %v1510
    %v1516 = vcombine.high %v1511, %v1511
    %v1518 = vsel %vm741, %v1510, %v1511
    %v1519 = vsel %vm742, %v1513, %v1516
    %v1520 = vsel %vm753, %v1506, 0
    %1522 = vmatprep.subr.mxu0 %v708
    %1523 = vmatpush1.msra.mxu0 %v707
    %1524 = vmatprep.subr.mxu0 %v710
    %1525 = vmatpush1.msra.mxu0 %v709
    %1526 = vmatprep.subr.mxu0 %v712
    %1527 = vmatpush1.msra.mxu0 %v711
    %1528 = vmatprep.subr.mxu0 %v714
    %1529 = vmatpush1.msra.mxu0 %v713
    %1530 = vmatprep.subr.mxu0 %v716
    %1531 = vmatpush1.msra.mxu0 %v715
    %1532 = vmatprep.subr.mxu0 %v718
    %1533 = vmatpush1.msra.mxu0 %v717
    %1534 = vmatprep.subr.mxu0 %v720
    %1535 = vmatpush1.msra.mxu0 %v719
    %1536 = vmatprep.subr.mxu0 %v722
    %1537 = vmatpush1.msra.mxu0 %v721
    %1538 = vmatprep.subr.mxu0 0.0
    %1539 = vmatpush1.msra.mxu0 0.0
    %1540 = vmatprep.subr.mxu0 0.0
    %1541 = vmatpush1.msra.mxu0 0.0
    %1542 = vmatprep.subr.mxu0 0.0
    %1543 = vmatpush1.msra.mxu0 0.0
    %1544 = vmatprep.subr.mxu0 0.0
    %1545 = vmatpush1.msra.mxu0 0.0
    %1546 = vmatprep.subr.mxu0 0.0
    %1547 = vmatpush1.msra.mxu0 0.0
    %1548 = vmatprep.subr.mxu0 0.0
    %1549 = vmatpush1.msra.mxu0 0.0
    %1550 = vmatprep.subr.mxu0 0.0
    %1551 = vmatpush1.msra.mxu0 0.0
    %1552 = vmatprep.subr.mxu0 0.0
    %1553 = vmatpush1.msra.mxu0 0.0
    %1554 = vmatprep.subr.mxu0 0.0
    %1555 = vmatpush1.msra.mxu0 0.0
    %1556 = vmatprep.subr.mxu0 0.0
    %1557 = vmatpush1.msra.mxu0 0.0
    %1558 = vmatprep.subr.mxu0 0.0
    %1559 = vmatpush1.msra.mxu0 0.0
    %1560 = vmatprep.subr.mxu0 0.0
    %1561 = vmatpush1.msra.mxu0 0.0
    %1562 = vmatprep.subr.mxu0 0.0
    %1563 = vmatpush1.msra.mxu0 0.0
    %1564 = vmatprep.subr.mxu0 0.0
    %1565 = vmatpush1.msra.mxu0 0.0
    %1566 = vmatprep.subr.mxu0 0.0
    %1567 = vmatpush1.msra.mxu0 0.0
    %1568 = vmatprep.subr.mxu0 0.0
    %1569 = vmatpush1.msra.mxu0 0.0
    %1570 = vmatprep.subr.mxu0 0.0
    %1571 = vmatpush1.msra.mxu0 0.0
    %1572 = vmatprep.subr.mxu0 0.0
    %1573 = vmatpush1.msra.mxu0 0.0
    %1574 = vmatprep.subr.mxu0 0.0
    %1575 = vmatpush1.msra.mxu0 0.0
    %1576 = vmatprep.subr.mxu0 0.0
    %1577 = vmatpush1.msra.mxu0 0.0
    %1578 = vmatprep.subr.mxu0 0.0
    %1579 = vmatpush1.msra.mxu0 0.0
    %1580 = vmatprep.subr.mxu0 0.0
    %1581 = vmatpush1.msra.mxu0 0.0
    %1582 = vmatprep.subr.mxu0 0.0
    %1583 = vmatpush1.msra.mxu0 0.0
    %1584 = vmatprep.subr.mxu0 0.0
    %1585 = vmatpush1.msra.mxu0 0.0
    %1586 = vmatprep.mubr.f32.mxu0 0.0
    %1587 = vmatmul.mubr.f32.gmra.mrb[0].mxu0 %v1520
    %v1588 = vpop.f32.mrb[0].mxu0
    %v1589 = vadd.f32 0.0, %v1588
    %v1590 = vpop.f32.mrb[0].mxu0
    %v1591 = vadd.f32 0.0, %v1590
    %1592 = vdwg.mxu0
    %v1593 = vadd.f32 %v1518, %v1589
    %v1594 = vxor.u32 %v1593, 2147483648
    %v1595 = vmul.f32 %v1594, 1.442695
    %v1596 = vpow.pop %v1595
    %v1597 = vadd.f32 %v1596, 1.0
    %v1598 = vrcp.pop %v1597
    %v1599 = vmul.f32 1.0, %v1598
    %v1600 = vadd.f32 %v1591, %v728
    %v1601 = vmul.f32 %v1599, %v1600
    %v1602 = vadd.f32 %v1519, %v1601
    %v1603 = vtanh.pop %v1602
    %v1604 = vsub.f32 1.0, %v1599
    %1606 = vrot.lane.b32.xlu0 %v1603, 64
    %v1607 = vpop.permute.xlu0 %1606
    %v1609 = vmul.f32 %v1604, %v1607
    %v1610 = vmul.f32 %v1599, %v1503
    %v1611 = vadd.f32 %v1609, %v1610
    %1613 = vrot.lane.b32.xlu0 %v1611, 64
    %v1614 = vpop.permute.xlu0 %1613
    %1616 = vst.msk [vmem:[%s853] sm:$0xf] %vm851, %v1614
    %1617 = vst.msk [vmem:[#allocation3] sm:$0xf] %vm854, %v1614
    %v1618 = vld [vmem:[%s6] sm:$0xff]
    %v1619 = vld [vmem:[%s6 + $0x8] sm:$0xff]
    %v1620 = vld [vmem:[%s6 + $0x10] sm:$0xff]
    %v1621 = vld [vmem:[%s6 + $0x18] sm:$0xff]
    %v1622 = vld [vmem:[%s6 + $0x20] sm:$0xff]
    %v1623 = vld [vmem:[%s6 + $0x28] sm:$0xff]
    %v1624 = vld [vmem:[%s6 + $0x30] sm:$0xff]
    %v1625 = vld [vmem:[%s6 + $0x38] sm:$0xff]
    %v1626 = vld [vmem:[%s7] sm:$0x1]
    %v1628 = vlaneseq
    %v1629 = vshrl.u32 %v1628, 7
    %v1630 = vsub.s32 0, %v1629
    %v1631 = vrot.slane %v1626, %v1630
    %v1633 = vsel %vm753, %v1614, 0
    %1635 = vmatprep.subr.mxu0 0.0
    %1636 = vmatpush1.msra.mxu0 %v1618
    %1637 = vmatprep.subr.mxu0 0.0
    %1638 = vmatpush1.msra.mxu0 %v1619
    %1639 = vmatprep.subr.mxu0 0.0
    %1640 = vmatpush1.msra.mxu0 %v1620
    %1641 = vmatprep.subr.mxu0 0.0
    %1642 = vmatpush1.msra.mxu0 %v1621
    %1643 = vmatprep.subr.mxu0 0.0
    %1644 = vmatpush1.msra.mxu0 %v1622
    %1645 = vmatprep.subr.mxu0 0.0
    %1646 = vmatpush1.msra.mxu0 %v1623
    %1647 = vmatprep.subr.mxu0 0.0
    %1648 = vmatpush1.msra.mxu0 %v1624
    %1649 = vmatprep.subr.mxu0 0.0
    %1650 = vmatpush1.msra.mxu0 %v1625
    %1651 = vmatprep.subr.mxu0 0.0
    %1652 = vmatpush1.msra.mxu0 0.0
    %1653 = vmatprep.subr.mxu0 0.0
    %1654 = vmatpush1.msra.mxu0 0.0
    %1655 = vmatprep.subr.mxu0 0.0
    %1656 = vmatpush1.msra.mxu0 0.0
    %1657 = vmatprep.subr.mxu0 0.0
    %1658 = vmatpush1.msra.mxu0 0.0
    %1659 = vmatprep.subr.mxu0 0.0
    %1660 = vmatpush1.msra.mxu0 0.0
    %1661 = vmatprep.subr.mxu0 0.0
    %1662 = vmatpush1.msra.mxu0 0.0
    %1663 = vmatprep.subr.mxu0 0.0
    %1664 = vmatpush1.msra.mxu0 0.0
    %1665 = vmatprep.subr.mxu0 0.0
    %1666 = vmatpush1.msra.mxu0 0.0
    %1667 = vmatprep.subr.mxu0 0.0
    %1668 = vmatpush1.msra.mxu0 0.0
    %1669 = vmatprep.subr.mxu0 0.0
    %1670 = vmatpush1.msra.mxu0 0.0
    %1671 = vmatprep.subr.mxu0 0.0
    %1672 = vmatpush1.msra.mxu0 0.0
    %1673 = vmatprep.subr.mxu0 0.0
    %1674 = vmatpush1.msra.mxu0 0.0
    %1675 = vmatprep.subr.mxu0 0.0
    %1676 = vmatpush1.msra.mxu0 0.0
    %1677 = vmatprep.subr.mxu0 0.0
    %1678 = vmatpush1.msra.mxu0 0.0
    %1679 = vmatprep.subr.mxu0 0.0
    %1680 = vmatpush1.msra.mxu0 0.0
    %1681 = vmatprep.subr.mxu0 0.0
    %1682 = vmatpush1.msra.mxu0 0.0
    %1683 = vmatprep.subr.mxu0 0.0
    %1684 = vmatpush1.msra.mxu0 0.0
    %1685 = vmatprep.subr.mxu0 0.0
    %1686 = vmatpush1.msra.mxu0 0.0
    %1687 = vmatprep.subr.mxu0 0.0
    %1688 = vmatpush1.msra.mxu0 0.0
    %1689 = vmatprep.subr.mxu0 0.0
    %1690 = vmatpush1.msra.mxu0 0.0
    %1691 = vmatprep.subr.mxu0 0.0
    %1692 = vmatpush1.msra.mxu0 0.0
    %1693 = vmatprep.subr.mxu0 0.0
    %1694 = vmatpush1.msra.mxu0 0.0
    %1695 = vmatprep.subr.mxu0 0.0
    %1696 = vmatpush1.msra.mxu0 0.0
    %1697 = vmatprep.subr.mxu0 0.0
    %1698 = vmatpush1.msra.mxu0 0.0
    %1699 = vmatprep.mubr.f32.mxu0 0.0
    %1700 = vmatmul.mubr.f32.gmra.mrb[0].mxu0 %v1633
    %v1701 = vpop.f32.mrb[0].mxu0
    %v1702 = vadd.f32 %v1631, %v1701
    %v1703 = vpop.f32.mrb[0].mxu0
    %1704 = vdwg.mxu0
    %v1705 = vtanh.pop %v1702
    %1706 = vst.msk [vmem:[#allocation5] sm:$0xf] %vm851, %v1705
    // Predicated region
    $region34: #{encoder_forward.1} parent=1 // pred_check
      _
    $region35: #{encoder_forward.1} parent=1 // pred_check_branch
      %1708 = sbr.rel (0) target = $region37
    $region36: #{encoder_forward.1} parent=1 // pred_region
      %s1710 = ssub.s32 512, 512
      %1711 = vsyncadd [#allocation4], %s1710
      %s1712 = sshll.u32 [#allocation3], 4
      %s1713 = int_to_ptr.vmem [resolvable:$true] %s1712
      %1718 = dma.vmem_to_hbm [thread:$0]  %s1713, 512, %s8, [#allocation4], 64, 64, 4
    $region37: #{encoder_forward.1} parent=1 // pred_fallthru
      _
    // Predicated region
    $region38: #{encoder_forward.1} parent=1 // pred_check
      _
    $region39: #{encoder_forward.1} parent=1 // pred_check_branch
      %1720 = sbr.rel (0) target = $region41
    $region40: #{encoder_forward.1} parent=1 // pred_region
      %s1722 = ssub.s32 64, 64
      %1723 = vsyncadd [#allocation6], %s1722
      %s1725 = sshll.u32 [#allocation5], 4
      %s1726 = int_to_ptr.vmem [resolvable:$true] %s1725
      %1728 = dma.vmem_to_hbm [thread:$0]  %s1726, 64, %s9, [#allocation6]
    $region41: #{encoder_forward.1} parent=1 // pred_fallthru
      _
    // Predicated region
    $region42: #{encoder_forward.1} parent=1 // pred_check
      _
    $region43: #{encoder_forward.1} parent=1 // pred_check_branch
      %1730 = sbr.rel (0) target = $region45
    $region44: #{encoder_forward.1} parent=1 // pred_region
      %1731 = dma.done [#allocation4], 512
    $region45: #{encoder_forward.1} parent=1 // pred_fallthru
      _
    // Predicated region
    $region46: #{encoder_forward.1} parent=1 // pred_check
      _
    $region47: #{encoder_forward.1} parent=1 // pred_check_branch
      %1733 = sbr.rel (0) target = $region49
    $region48: #{encoder_forward.1} parent=1 // pred_region
      %1734 = dma.done [#allocation6], 64
    $region49: #{encoder_forward.1} parent=1 // pred_fallthru
      _
    %1735 = vsyncpa [#allocation4], 1
    %1736 = vsyncpa [#allocation6], 1

</llo_original>
